<compile_context>
chip_gen: v7x
topology: tpu7x:2x2x1
jax: 0.10.0
libtpu: 0.0.40
codegen_flags: <defaults>
</compile_context>

<pallas_src>
import functools

import jax
import jax.numpy as jnp
import numpy as np
from jax.experimental import pallas as pl
from jax.experimental.pallas import tpu as pltpu


def _round_up(n, m):
    return -(-n // m) * m


def _pick_tile_t(T, C, L, K, out_bytes):
    """Lane-dense (multiple of 128) time tile: big enough that each grid step moves
    ~1 MiB of HBM traffic, small enough that the double-buffered working set fits
    comfortably inside v7x's 64 MiB VMEM."""
    hbm_per_samp = C * (4 + (1 + L) * out_bytes)               # x in + (x_out + z) out
    tile = _round_up(max(128, (1 << 20) // hbm_per_samp), 128)
    vmem_per_samp = C * (48 + 12 * L + 4 * K)                  # dbuf io + scratch + temps
    vmem_cap = max(128, ((34 << 20) // vmem_per_samp) // 128 * 128)
    return min(tile, vmem_cap, 16 * 1024)


def _fused_block_kernel(x_ref, wc_ref, bc_ref, wm_ref, bm_ref, xout_ref, z_ref, *wins,
                        dilations, kernel_size, tile_t, channels, fuse_gates):
    """One (batch, time-tile) grid step; loops over all layers with x resident in VMEM.

    x_ref    : (1, C, tT)                       block input tile
    wc_ref   : (L, K, 2C, C)   if fuse_gates    per-tap conv weights
               (2L, K, C, C)   otherwise        [0..L-1] tanh half, [L..2L-1] sigmoid
    bc_ref   : (L, 2C, 1) / (2L, C, 1)          conv bias
    wm_ref   : (L, C, C)                        1x1 mix weights
    bm_ref   : (L, C, 1)                        mix bias
    xout_ref : (1, C, tT)                       final-layer output tile
    z_ref    : (1, L, C, tT)                    per-layer gated activations
    wins     : L x (C, round_up(pad,128)+tT)    persistent causal window scratch
    """
    t = pl.program_id(1)
    C, K, tT = channels, kernel_size, tile_t
    nl = len(dilations)

    # Global time index of each column of this tile: the first `pad` samples of the
    # full sequence must be exactly zero in z (torch.cat((zeros, z), dim=2)).
    col = jax.lax.broadcasted_iota(jnp.int32, (1, tT), 1) + t * tT

    x_cur = x_ref[0].astype(jnp.float32)                       # (C, tT) layer input

    for l, dil in enumerate(dilations):
        pad = dil * (K - 1)
        if pad > 0:
            pad_al = _round_up(pad, 128)
            base = pad_al - pad
            win = wins[l]                                      # (C, pad_al + tT)

            @pl.when(t == 0)
            def _init(win=win, pad_al=pad_al):                 # causal start: no history
                win[:, :pad_al] = jnp.zeros((C, pad_al), jnp.float32)

            win[:, pad_al:] = x_cur                            # lane-aligned store
            # K dilated taps: static slices of the window; last tap is x_cur itself.
            taps = [win[:, base + k * dil: base + k * dil + tT] for k in range(K - 1)]
            taps.append(x_cur)
            # Carry the last `pad` stream samples into the next time tile.
            if pad <= tT:
                win[:, base:pad_al] = x_cur[:, tT - pad:]
            else:  # huge dilation: carry spans old history + the whole current tile
                win[:, base:pad_al] = win[:, pad_al + tT - pad: pad_al + tT]
        else:                                                  # K == 1: no history
            taps = [x_cur]

        # K accumulating MXU dots per gate half (no im2col concat), f32 accumulation.
        if fuse_gates:
            y = jnp.dot(wc_ref[l, 0], taps[0], preferred_element_type=jnp.float32)
            for k in range(1, K):
                y = y + jnp.dot(wc_ref[l, k], taps[k],
                                preferred_element_type=jnp.float32)
            y = y + bc_ref[l]
            yt, ys = y[:C], y[C:]                              # sublane-aligned split
        else:
            yt = jnp.dot(wc_ref[l, 0], taps[0], preferred_element_type=jnp.float32)
            ys = jnp.dot(wc_ref[nl + l, 0], taps[0], preferred_element_type=jnp.float32)
            for k in range(1, K):
                yt = yt + jnp.dot(wc_ref[l, k], taps[k],
                                  preferred_element_type=jnp.float32)
                ys = ys + jnp.dot(wc_ref[nl + l, k], taps[k],
                                  preferred_element_type=jnp.float32)
            yt = yt + bc_ref[l]
            ys = ys + bc_ref[nl + l]

        # sigmoid(ys) = 0.5 * tanh(0.5 * ys) + 0.5  (one EUP op instead of exp + recip)
        z = jnp.tanh(yt) * (0.5 * jnp.tanh(0.5 * ys) + 0.5)
        if pad > 0:
            z = jnp.where(col >= pad, z, 0.0)
        z_ref[0, l] = z.astype(z_ref.dtype)

        # 1x1 mix + residual -> next layer's input (stays in vregs / VMEM).
        x_cur = (jnp.dot(wm_ref[l], z, preferred_element_type=jnp.float32)
                 + bm_ref[l] + x_cur)

    xout_ref[0] = x_cur.astype(xout_ref.dtype)


def res_conv_block(x, params, kernel_size, *, tile_t=None, out_dtype=None,
                   crop_output=True):
    """Pallas implementation of ResConvBlock1DCausalGated.forward -> (x, z)."""
    B, Cin, T = x.shape
    C = params[0]["wm"].shape[0]
    L = len(params)
    K = kernel_size
    dilations = tuple(int(p["dilation"]) for p in params)
    pads = [d * (K - 1) for d in dilations]
    pad_als = [_round_up(p, 128) for p in pads]
    out_dtype = x.dtype if out_dtype is None else jnp.dtype(out_dtype)
    ob = jnp.dtype(out_dtype).itemsize
    fuse_gates = (C % 8 == 0)

    # Torch residual semantics: chan_input must equal chan_output, or broadcast from 1.
    if Cin == C:
        x_in = x
        wc0 = params[0]["wc"]
    elif Cin == 1:
        x_in = jnp.broadcast_to(x, (B, C, T))
        wc0 = jnp.concatenate(
            [params[0]["wc"], jnp.zeros((2 * C, C - 1, K), params[0]["wc"].dtype)],
            axis=1)
    else:
        raise ValueError("chan_input must equal chan_output (or be 1) for the residual")

    # Pack all layer weights once (tiny; resident in VMEM for the whole call).
    w_taps, bcs, wms, bms = [], [], [], []
    for l, p in enumerate(params):
        wc = wc0 if l == 0 else p["wc"]                        # (2C, C, K)
        w_taps.append(jnp.transpose(wc, (2, 0, 1)))            # (K, 2C, C): one tap/dot
        bcs.append(p["bc"].reshape(2 * C, 1))
        wms.append(p["wm"].reshape(C, C))
        bms.append(p["bm"].reshape(C, 1))
    w_taps = jnp.stack(w_taps).astype(jnp.float32)             # (L, K, 2C, C)
    bcs = jnp.stack(bcs).astype(jnp.float32)                   # (L, 2C, 1)
    wms = jnp.stack(wms).astype(jnp.float32)                   # (L, C, C)
    bms = jnp.stack(bms).astype(jnp.float32)                   # (L, C, 1)
    if fuse_gates:
        wc_all, bc_all = w_taps, bcs
    else:  # keep tanh/sigmoid halves separate so no slice crosses a sublane tile
        wc_all = jnp.concatenate([w_taps[:, :, :C, :], w_taps[:, :, C:, :]], axis=0)
        bc_all = jnp.concatenate([bcs[:, :C], bcs[:, C:]], axis=0)

    # Lane-dense time tiles; pad T on the right (causal conv => padding never leaks left).
    if tile_t is None:
        tile_t = _pick_tile_t(T, C, L, K, ob)
    else:
        tile_t = max(128, _round_up(int(tile_t), 128))
    tile_t = min(tile_t, _round_up(T, 128))                    # don't over-pad short T
    Tp = _round_up(T, tile_t)
    if Tp != T:
        x_in = jnp.pad(x_in, ((0, 0), (0, 0), (0, Tp - T)))
    nT = Tp // tile_t

    # VMEM budget: always set the limit (v5e default is only 16 MiB), cap below v7x's
    # 64 MiB physical VMEM.  Estimate includes double-buffered tiles + window scratch.
    wbytes = 4 * (wc_all.size + bc_all.size + wms.size + bms.size)
    est = (2 * C * tile_t * 4                     # x input tile (double-buffered)
           + 2 * C * tile_t * ob                  # x_out tile
           + 2 * L * C * tile_t * ob              # z tile
           + 2 * wbytes                           # weights (revolving buffers)
           + (sum(C * (pa + tile_t) * 4 for pa in pad_als) if K > 1 else 0)
           + (K + 8) * C * tile_t * 4)            # in-kernel f32 temporaries
    vmem_limit = int(min(max(est * 1.5, 32 * 1024 * 1024), 56 * 1024 * 1024))

    kernel = functools.partial(_fused_block_kernel, dilations=dilations, kernel_size=K,
                               tile_t=tile_t, channels=C, fuse_gates=fuse_gates)

    scratch = ([pltpu.VMEM((C, pa + tile_t), jnp.float32) for pa in pad_als]
               if K > 1 else [])

    x_out, z = pl.pallas_call(
        kernel,
        out_shape=(jax.ShapeDtypeStruct((B, C, Tp), out_dtype),
                   jax.ShapeDtypeStruct((B, L, C, Tp), out_dtype)),
        grid=(B, nT),
        in_specs=[
            pl.BlockSpec((1, C, tile_t), lambda b, t: (b, 0, t)),
            pl.BlockSpec(wc_all.shape, lambda b, t: (0, 0, 0, 0)),
            pl.BlockSpec(bc_all.shape, lambda b, t: (0, 0, 0)),
            pl.BlockSpec(wms.shape, lambda b, t: (0, 0, 0)),
            pl.BlockSpec(bms.shape, lambda b, t: (0, 0, 0)),
        ],
        out_specs=(pl.BlockSpec((1, C, tile_t), lambda b, t: (b, 0, t)),
                   pl.BlockSpec((1, L, C, tile_t), lambda b, t: (b, 0, 0, t))),
        scratch_shapes=scratch,
        compiler_params=pltpu.CompilerParams(
            dimension_semantics=("parallel", "arbitrary"),
            vmem_limit_bytes=vmem_limit),
    )(x_in, wc_all, bc_all, wms, bms)

    z = z.reshape(B, L * C, Tp)        # merges adjacent dims: free, no data movement
    if crop_output and Tp != T:
        # Only taken when T is not a multiple of 128; long-audio consumers can pass
        # crop_output=False to avoid this extra HBM round trip over z.
        x_out = x_out[:, :, :T]
        z = z[:, :, :T]
    return x_out, z


def init_block_params(key, chan_input, chan_output, dilation_growth, kernel_size, layers):
    """Deterministic init mirroring nn.Conv1d default (uniform +- 1/sqrt(fan_in))."""
    params = []
    cin = chan_input
    for lay in range(layers):
        dil = dilation_growth ** lay
        key, k1, k2, k3, k4 = jax.random.split(key, 5)
        bnd_c = 1.0 / np.sqrt(cin * kernel_size)
        wc = jax.random.uniform(k1, (2 * chan_output, cin, kernel_size),
                                jnp.float32, -bnd_c, bnd_c)
        bc = jax.random.uniform(k2, (2 * chan_output,), jnp.float32, -bnd_c, bnd_c)
        bnd_m = 1.0 / np.sqrt(chan_output)
        wm = jax.random.uniform(k3, (chan_output, chan_output), jnp.float32, -bnd_m, bnd_m)
        bm = jax.random.uniform(k4, (chan_output,), jnp.float32, -bnd_m, bnd_m)
        params.append(dict(wc=wc, bc=bc, wm=wm, bm=bm, dilation=dil))
        cin = chan_output
    return params


# ---------------- pure-JAX reference (torch semantics) for verification ----------------
def _ref_layer(x, wc, bc, wm, bm, dilation, kernel_size):
    B, Cin, T = x.shape
    C = wm.shape[0]
    pad = dilation * (kernel_size - 1)
    Tout = T - pad
    y = jnp.zeros((B, 2 * C, Tout), jnp.float32)
    for k in range(kernel_size):
        y = y + jnp.einsum('oc,bct->bot', wc[:, :, k],
                           x[:, :, k * dilation: k * dilation + Tout])
    y = y + bc[None, :, None]
    z = jnp.tanh(y[:, :C]) * jax.nn.sigmoid(y[:, C:])
    z = jnp.concatenate([jnp.zeros((B, C, pad), jnp.float32), z], axis=2)
    xo = jnp.einsum('oc,bct->bot', wm, z) + bm[None, :, None] + x
    return xo, z


def _ref_block(x, params, kernel_size):
    zs = []
    for p in params:
        x, zn = _ref_layer(x, p["wc"], p["bc"], p["wm"], p["bm"],
                           p["dilation"], kernel_size)
        zs.append(zn)
    return x, jnp.concatenate(zs, axis=1)


if __name__ == "__main__":
    B, Cin, Cout, T = 2, 4, 4, 16
    kernel_size, dilation_growth, layers = 3, 2, 3   # dilations 1, 2, 4 (recept. field 15)

    key = jax.random.PRNGKey(0)
    kx, kp, kx2 = jax.random.split(key, 3)
    x = jax.random.normal(kx, (B, Cin, T), jnp.float32)
    params = init_block_params(kp, Cin, Cout, dilation_growth, kernel_size, layers)

    # 1) exact check (f32 outputs), tiny single-tile input.
    x_out, z_out = res_conv_block(x, params, kernel_size, out_dtype=jnp.float32)
    jax.block_until_ready((x_out, z_out))
    xr, zr = _ref_block(x, params, kernel_size)
    np.testing.assert_allclose(np.asarray(x_out), np.asarray(xr), rtol=1e-5, atol=1e-5)
    np.testing.assert_allclose(np.asarray(z_out), np.asarray(zr), rtol=1e-5, atol=1e-5)

    # 2) multi-tile streaming path: causal state carried across 128-sample tiles + crop.
    T2 = 300
    x2 = jax.random.normal(kx2, (B, Cin, T2), jnp.float32)
    x_out2, z_out2 = res_conv_block(x2, params, kernel_size, tile_t=128,
                                    out_dtype=jnp.float32)
    jax.block_until_ready((x_out2, z_out2))
    xr2, zr2 = _ref_block(x2, params, kernel_size)
    np.testing.assert_allclose(np.asarray(x_out2), np.asarray(xr2), rtol=1e-5, atol=1e-5)
    np.testing.assert_allclose(np.asarray(z_out2), np.asarray(zr2), rtol=1e-5, atol=1e-5)

    # 3) bf16-output fast path (f32 math inside, cast only at the stores).
    x_out3, z_out3 = res_conv_block(x2, params, kernel_size, out_dtype=jnp.bfloat16)
    jax.block_until_ready((x_out3, z_out3))
    np.testing.assert_allclose(np.asarray(x_out3.astype(jnp.float32)), np.asarray(xr2),
                               rtol=2e-2, atol=2e-2)
    np.testing.assert_allclose(np.asarray(z_out3.astype(jnp.float32)), np.asarray(zr2),
                               rtol=2e-2, atol=2e-2)

    # 4) fused tanh/sigmoid gate path (C multiple of 8 -> one (2C,C) dot per tap).
    kp2, kx4 = jax.random.split(kp)
    params4 = init_block_params(kp2, 8, 8, 2, kernel_size, 2)
    x4 = jax.random.normal(kx4, (2, 8, 160), jnp.float32)
    x_out4, z_out4 = res_conv_block(x4, params4, kernel_size, out_dtype=jnp.float32)
    jax.block_until_ready((x_out4, z_out4))
    xr4, zr4 = _ref_block(x4, params4, kernel_size)
    np.testing.assert_allclose(np.asarray(x_out4), np.asarray(xr4), rtol=1e-5, atol=1e-5)
    np.testing.assert_allclose(np.asarray(z_out4), np.asarray(zr4), rtol=1e-5, atol=1e-5)

    print("KERNEL_OK")
</pallas_src>

<mosaic_0001>
module attributes {stable_mosaic.version = 11 : i64} {
  func.func @_fused_block_kernel(%arg0: i32, %arg1: i32, %arg2: memref<1x4x128xf32, #tpu.memory_space<vmem>>, %arg3: memref<6x3x4x4xf32, #tpu.memory_space<vmem>>, %arg4: memref<6x4x1xf32, #tpu.memory_space<vmem>>, %arg5: memref<3x4x4xf32, #tpu.memory_space<vmem>>, %arg6: memref<3x4x1xf32, #tpu.memory_space<vmem>>, %arg7: memref<1x4x128xf32, #tpu.memory_space<vmem>>, %arg8: memref<1x3x4x128xf32, #tpu.memory_space<vmem>>, %arg9: memref<4x256xf32, #tpu.memory_space<vmem>>, %arg10: memref<4x256xf32, #tpu.memory_space<vmem>>, %arg11: memref<4x256xf32, #tpu.memory_space<vmem>>) attributes {dimension_semantics = [#tpu.dimension_semantics<parallel>, #tpu.dimension_semantics<arbitrary>], iteration_bounds = array<i64: 2, 1>, scalar_prefetch = 0 : i64, scratch_operands = 3 : i64, tpu.core_type = #tpu.core_type<tc>, window_params = [{transform_indices = @transform_0, window_bounds = array<i64: 1, 4, 128>}, {pipeline_mode = #tpu.pipeline_mode<synchronous>, transform_indices = @transform_1, window_bounds = array<i64: 6, 3, 4, 4>}, {pipeline_mode = #tpu.pipeline_mode<synchronous>, transform_indices = @transform_2, window_bounds = array<i64: 6, 4, 1>}, {pipeline_mode = #tpu.pipeline_mode<synchronous>, transform_indices = @transform_3, window_bounds = array<i64: 3, 4, 4>}, {pipeline_mode = #tpu.pipeline_mode<synchronous>, transform_indices = @transform_4, window_bounds = array<i64: 3, 4, 1>}, {transform_indices = @transform_5, window_bounds = array<i64: 1, 4, 128>}, {transform_indices = @transform_6, window_bounds = array<i64: 1, 3, 4, 128>}]} {
    %0 = tpu.iota {dimensions = array<i32: 1>} : vector<1x128xi32>
    %c128_i32 = arith.constant 128 : i32
    %1 = arith.muli %arg1, %c128_i32 : i32
    %2 = vector.broadcast %1 : i32 to vector<1x128xi32>
    %3 = arith.addi %0, %2 : vector<1x128xi32>
    %c0 = arith.constant 0 : index
    %c0_0 = arith.constant 0 : index
    %c0_1 = arith.constant 0 : index
    %4 = vector.load %arg2[%c0, %c0_0, %c0_1] : memref<1x4x128xf32, #tpu.memory_space<vmem>>, vector<1x4x128xf32>
    %5 = vector.shape_cast %4 : vector<1x4x128xf32> to vector<4x128xf32>
    %c0_i32 = arith.constant 0 : i32
    %6 = arith.cmpi eq, %arg1, %c0_i32 : i32
    %7 = arith.extui %6 : i1 to i32
    %c0_i32_2 = arith.constant 0 : i32
    %8 = arith.cmpi ne, %7, %c0_i32_2 : i32
    scf.if %8 {
      %cst_176 = arith.constant 0.000000e+00 : f32
      %201 = vector.broadcast %cst_176 : f32 to vector<4x128xf32>
      %c0_177 = arith.constant 0 : index
      %c0_178 = arith.constant 0 : index
      %202 = vector.load %arg9[%c0_177, %c0_178] : memref<4x256xf32, #tpu.memory_space<vmem>>, vector<4x128xf32>
      tpu.vector_store %arg9[%c0_177, %c0_178], %201 {strides = array<i32>} : memref<4x256xf32, #tpu.memory_space<vmem>>, vector<4x128xf32>,
    } else {
    }
    %c0_3 = arith.constant 0 : index
    %c128 = arith.constant 128 : index
    %9 = vector.load %arg9[%c0_3, %c128] : memref<4x256xf32, #tpu.memory_space<vmem>>, vector<4x128xf32>
    tpu.vector_store %arg9[%c0_3, %c128], %5 {strides = array<i32>} : memref<4x256xf32, #tpu.memory_space<vmem>>, vector<4x128xf32>,
    %c0_4 = arith.constant 0 : index
    %c126 = arith.constant 126 : index
    %10 = vector.load %arg9[%c0_4, %c126] : memref<4x256xf32, #tpu.memory_space<vmem>>, vector<4x128xf32>
    %c0_5 = arith.constant 0 : index
    %c127 = arith.constant 127 : index
    %11 = vector.load %arg9[%c0_5, %c127] : memref<4x256xf32, #tpu.memory_space<vmem>>, vector<4x128xf32>
    %12 = vector.extract_strided_slice %5 {offsets = [0, 126], sizes = [4, 2], strides = [1, 1]} : vector<4x128xf32> to vector<4x2xf32>
    %c0_6 = arith.constant 0 : index
    %c126_7 = arith.constant 126 : index
    %13 = vector.load %arg9[%c0_6, %c126_7] : memref<4x256xf32, #tpu.memory_space<vmem>>, vector<4x2xf32>
    tpu.vector_store %arg9[%c0_6, %c126_7], %12 {strides = array<i32>} : memref<4x256xf32, #tpu.memory_space<vmem>>, vector<4x2xf32>,
    %c0_8 = arith.constant 0 : index
    %c0_9 = arith.constant 0 : index
    %c0_10 = arith.constant 0 : index
    %c0_11 = arith.constant 0 : index
    %14 = vector.load %arg3[%c0_8, %c0_9, %c0_10, %c0_11] : memref<6x3x4x4xf32, #tpu.memory_space<vmem>>, vector<1x1x4x4xf32>
    %15 = vector.shape_cast %14 : vector<1x1x4x4xf32> to vector<4x4xf32>
    %cst = arith.constant dense<0.000000e+00> : vector<4x128xf32>
    %16 = tpu.matmul %15, %10, %cst {dimension_numbers = #tpu.dot_dimension_numbers<[1], [0], [0], [1], [0, 0, 1, 1], [], []>} : vector<4x4xf32>, vector<4x128xf32>, vector<4x128xf32> -> vector<4x128xf32>
    %c3 = arith.constant 3 : index
    %c0_12 = arith.constant 0 : index
    %c0_13 = arith.constant 0 : index
    %c0_14 = arith.constant 0 : index
    %17 = vector.load %arg3[%c3, %c0_12, %c0_13, %c0_14] : memref<6x3x4x4xf32, #tpu.memory_space<vmem>>, vector<1x1x4x4xf32>
    %18 = vector.shape_cast %17 : vector<1x1x4x4xf32> to vector<4x4xf32>
    %cst_15 = arith.constant dense<0.000000e+00> : vector<4x128xf32>
    %19 = tpu.matmul %18, %10, %cst_15 {dimension_numbers = #tpu.dot_dimension_numbers<[1], [0], [0], [1], [0, 0, 1, 1], [], []>} : vector<4x4xf32>, vector<4x128xf32>, vector<4x128xf32> -> vector<4x128xf32>
    %c0_16 = arith.constant 0 : index
    %c1 = arith.constant 1 : index
    %c0_17 = arith.constant 0 : index
    %c0_18 = arith.constant 0 : index
    %20 = vector.load %arg3[%c0_16, %c1, %c0_17, %c0_18] : memref<6x3x4x4xf32, #tpu.memory_space<vmem>>, vector<1x1x4x4xf32>
    %21 = vector.shape_cast %20 : vector<1x1x4x4xf32> to vector<4x4xf32>
    %cst_19 = arith.constant dense<0.000000e+00> : vector<4x128xf32>
    %22 = tpu.matmul %21, %11, %cst_19 {dimension_numbers = #tpu.dot_dimension_numbers<[1], [0], [0], [1], [0, 0, 1, 1], [], []>} : vector<4x4xf32>, vector<4x128xf32>, vector<4x128xf32> -> vector<4x128xf32>
    %23 = arith.addf %16, %22 : vector<4x128xf32>
    %c3_20 = arith.constant 3 : index
    %c1_21 = arith.constant 1 : index
    %c0_22 = arith.constant 0 : index
    %c0_23 = arith.constant 0 : index
    %24 = vector.load %arg3[%c3_20, %c1_21, %c0_22, %c0_23] : memref<6x3x4x4xf32, #tpu.memory_space<vmem>>, vector<1x1x4x4xf32>
    %25 = vector.shape_cast %24 : vector<1x1x4x4xf32> to vector<4x4xf32>
    %cst_24 = arith.constant dense<0.000000e+00> : vector<4x128xf32>
    %26 = tpu.matmul %25, %11, %cst_24 {dimension_numbers = #tpu.dot_dimension_numbers<[1], [0], [0], [1], [0, 0, 1, 1], [], []>} : vector<4x4xf32>, vector<4x128xf32>, vector<4x128xf32> -> vector<4x128xf32>
    %27 = arith.addf %19, %26 : vector<4x128xf32>
    %c0_25 = arith.constant 0 : index
    %c2 = arith.constant 2 : index
    %c0_26 = arith.constant 0 : index
    %c0_27 = arith.constant 0 : index
    %28 = vector.load %arg3[%c0_25, %c2, %c0_26, %c0_27] : memref<6x3x4x4xf32, #tpu.memory_space<vmem>>, vector<1x1x4x4xf32>
    %29 = vector.shape_cast %28 : vector<1x1x4x4xf32> to vector<4x4xf32>
    %cst_28 = arith.constant dense<0.000000e+00> : vector<4x128xf32>
    %30 = tpu.matmul %29, %5, %cst_28 {dimension_numbers = #tpu.dot_dimension_numbers<[1], [0], [0], [1], [0, 0, 1, 1], [], []>} : vector<4x4xf32>, vector<4x128xf32>, vector<4x128xf32> -> vector<4x128xf32>
    %31 = arith.addf %23, %30 : vector<4x128xf32>
    %c3_29 = arith.constant 3 : index
    %c2_30 = arith.constant 2 : index
    %c0_31 = arith.constant 0 : index
    %c0_32 = arith.constant 0 : index
    %32 = vector.load %arg3[%c3_29, %c2_30, %c0_31, %c0_32] : memref<6x3x4x4xf32, #tpu.memory_space<vmem>>, vector<1x1x4x4xf32>
    %33 = vector.shape_cast %32 : vector<1x1x4x4xf32> to vector<4x4xf32>
    %cst_33 = arith.constant dense<0.000000e+00> : vector<4x128xf32>
    %34 = tpu.matmul %33, %5, %cst_33 {dimension_numbers = #tpu.dot_dimension_numbers<[1], [0], [0], [1], [0, 0, 1, 1], [], []>} : vector<4x4xf32>, vector<4x128xf32>, vector<4x128xf32> -> vector<4x128xf32>
    %35 = arith.addf %27, %34 : vector<4x128xf32>
    %c0_34 = arith.constant 0 : index
    %c0_35 = arith.constant 0 : index
    %c0_36 = arith.constant 0 : index
    %36 = vector.load %arg4[%c0_34, %c0_35, %c0_36] : memref<6x4x1xf32, #tpu.memory_space<vmem>>, vector<1x4x1xf32>
    %37 = vector.shape_cast %36 : vector<1x4x1xf32> to vector<4x1xf32>
    %38 = vector.broadcast %37 : vector<4x1xf32> to vector<4x128xf32>
    %39 = arith.addf %31, %38 : vector<4x128xf32>
    %c3_37 = arith.constant 3 : index
    %c0_38 = arith.constant 0 : index
    %c0_39 = arith.constant 0 : index
    %40 = vector.load %arg4[%c3_37, %c0_38, %c0_39] : memref<6x4x1xf32, #tpu.memory_space<vmem>>, vector<1x4x1xf32>
    %41 = vector.shape_cast %40 : vector<1x4x1xf32> to vector<4x1xf32>
    %42 = vector.broadcast %41 : vector<4x1xf32> to vector<4x128xf32>
    %43 = arith.addf %35, %42 : vector<4x128xf32>
    %44 = math.tanh %39 : vector<4x128xf32>
    %cst_40 = arith.constant 5.000000e-01 : f32
    %45 = vector.broadcast %cst_40 : f32 to vector<4x128xf32>
    %46 = arith.mulf %45, %43 : vector<4x128xf32>
    %47 = math.tanh %46 : vector<4x128xf32>
    %cst_41 = arith.constant 5.000000e-01 : f32
    %48 = vector.broadcast %cst_41 : f32 to vector<4x128xf32>
    %49 = arith.mulf %48, %47 : vector<4x128xf32>
    %cst_42 = arith.constant 5.000000e-01 : f32
    %50 = vector.broadcast %cst_42 : f32 to vector<4x128xf32>
    %51 = arith.addf %49, %50 : vector<4x128xf32>
    %52 = arith.mulf %44, %51 : vector<4x128xf32>
    %c2_i32 = arith.constant 2 : i32
    %53 = vector.broadcast %c2_i32 : i32 to vector<1x128xi32>
    %54 = arith.cmpi sge, %3, %53 : vector<1x128xi32>
    %cst_43 = arith.constant 0.000000e+00 : f32
    %55 = vector.shape_cast %54 : vector<1x128xi1> to vector<1x128xi1>
    %56 = vector.broadcast %55 : vector<1x128xi1> to vector<4x128xi1>
    %57 = vector.broadcast %cst_43 : f32 to vector<4x128xf32>
    %58 = arith.select %56, %52, %57 : vector<4x128xi1>, vector<4x128xf32>
    %c0_44 = arith.constant 0 : index
    %c0_45 = arith.constant 0 : index
    %c0_46 = arith.constant 0 : index
    %c0_47 = arith.constant 0 : index
    %59 = vector.load %arg8[%c0_44, %c0_45, %c0_46, %c0_47] : memref<1x3x4x128xf32, #tpu.memory_space<vmem>>, vector<1x1x4x128xf32>
    %60 = vector.shape_cast %59 : vector<1x1x4x128xf32> to vector<4x128xf32>
    %61 = vector.shape_cast %58 : vector<4x128xf32> to vector<1x1x4x128xf32>
    tpu.vector_store %arg8[%c0_44, %c0_45, %c0_46, %c0_47], %61 {strides = array<i32>} : memref<1x3x4x128xf32, #tpu.memory_space<vmem>>, vector<1x1x4x128xf32>,
    %c0_48 = arith.constant 0 : index
    %c0_49 = arith.constant 0 : index
    %c0_50 = arith.constant 0 : index
    %62 = vector.load %arg5[%c0_48, %c0_49, %c0_50] : memref<3x4x4xf32, #tpu.memory_space<vmem>>, vector<1x4x4xf32>
    %63 = vector.shape_cast %62 : vector<1x4x4xf32> to vector<4x4xf32>
    %cst_51 = arith.constant dense<0.000000e+00> : vector<4x128xf32>
    %64 = tpu.matmul %63, %58, %cst_51 {dimension_numbers = #tpu.dot_dimension_numbers<[1], [0], [0], [1], [0, 0, 1, 1], [], []>} : vector<4x4xf32>, vector<4x128xf32>, vector<4x128xf32> -> vector<4x128xf32>
    %c0_52 = arith.constant 0 : index
    %c0_53 = arith.constant 0 : index
    %c0_54 = arith.constant 0 : index
    %65 = vector.load %arg6[%c0_52, %c0_53, %c0_54] : memref<3x4x1xf32, #tpu.memory_space<vmem>>, vector<1x4x1xf32>
    %66 = vector.shape_cast %65 : vector<1x4x1xf32> to vector<4x1xf32>
    %67 = vector.broadcast %66 : vector<4x1xf32> to vector<4x128xf32>
    %68 = arith.addf %64, %67 : vector<4x128xf32>
    %69 = arith.addf %68, %5 : vector<4x128xf32>
    %c0_i32_55 = arith.constant 0 : i32
    %70 = arith.cmpi eq, %arg1, %c0_i32_55 : i32
    %71 = arith.extui %70 : i1 to i32
    %c0_i32_56 = arith.constant 0 : i32
    %72 = arith.cmpi ne, %71, %c0_i32_56 : i32
    scf.if %72 {
      %cst_176 = arith.constant 0.000000e+00 : f32
      %201 = vector.broadcast %cst_176 : f32 to vector<4x128xf32>
      %c0_177 = arith.constant 0 : index
      %c0_178 = arith.constant 0 : index
      %202 = vector.load %arg10[%c0_177, %c0_178] : memref<4x256xf32, #tpu.memory_space<vmem>>, vector<4x128xf32>
      tpu.vector_store %arg10[%c0_177, %c0_178], %201 {strides = array<i32>} : memref<4x256xf32, #tpu.memory_space<vmem>>, vector<4x128xf32>,
    } else {
    }
    %c0_57 = arith.constant 0 : index
    %c128_58 = arith.constant 128 : index
    %73 = vector.load %arg10[%c0_57, %c128_58] : memref<4x256xf32, #tpu.memory_space<vmem>>, vector<4x128xf32>
    tpu.vector_store %arg10[%c0_57, %c128_58], %69 {strides = array<i32>} : memref<4x256xf32, #tpu.memory_space<vmem>>, vector<4x128xf32>,
    %c0_59 = arith.constant 0 : index
    %c124 = arith.constant 124 : index
    %74 = vector.load %arg10[%c0_59, %c124] : memref<4x256xf32, #tpu.memory_space<vmem>>, vector<4x128xf32>
    %c0_60 = arith.constant 0 : index
    %c126_61 = arith.constant 126 : index
    %75 = vector.load %arg10[%c0_60, %c126_61] : memref<4x256xf32, #tpu.memory_space<vmem>>, vector<4x128xf32>
    %76 = vector.extract_strided_slice %69 {offsets = [0, 124], sizes = [4, 4], strides = [1, 1]} : vector<4x128xf32> to vector<4x4xf32>
    %c0_62 = arith.constant 0 : index
    %c124_63 = arith.constant 124 : index
    %77 = vector.load %arg10[%c0_62, %c124_63] : memref<4x256xf32, #tpu.memory_space<vmem>>, vector<4x4xf32>
    tpu.vector_store %arg10[%c0_62, %c124_63], %76 {strides = array<i32>} : memref<4x256xf32, #tpu.memory_space<vmem>>, vector<4x4xf32>,
    %c1_64 = arith.constant 1 : index
    %c0_65 = arith.constant 0 : index
    %c0_66 = arith.constant 0 : index
    %c0_67 = arith.constant 0 : index
    %78 = vector.load %arg3[%c1_64, %c0_65, %c0_66, %c0_67] : memref<6x3x4x4xf32, #tpu.memory_space<vmem>>, vector<1x1x4x4xf32>
    %79 = vector.shape_cast %78 : vector<1x1x4x4xf32> to vector<4x4xf32>
    %cst_68 = arith.constant dense<0.000000e+00> : vector<4x128xf32>
    %80 = tpu.matmul %79, %74, %cst_68 {dimension_numbers = #tpu.dot_dimension_numbers<[1], [0], [0], [1], [0, 0, 1, 1], [], []>} : vector<4x4xf32>, vector<4x128xf32>, vector<4x128xf32> -> vector<4x128xf32>
    %c4 = arith.constant 4 : index
    %c0_69 = arith.constant 0 : index
    %c0_70 = arith.constant 0 : index
    %c0_71 = arith.constant 0 : index
    %81 = vector.load %arg3[%c4, %c0_69, %c0_70, %c0_71] : memref<6x3x4x4xf32, #tpu.memory_space<vmem>>, vector<1x1x4x4xf32>
    %82 = vector.shape_cast %81 : vector<1x1x4x4xf32> to vector<4x4xf32>
    %cst_72 = arith.constant dense<0.000000e+00> : vector<4x128xf32>
    %83 = tpu.matmul %82, %74, %cst_72 {dimension_numbers = #tpu.dot_dimension_numbers<[1], [0], [0], [1], [0, 0, 1, 1], [], []>} : vector<4x4xf32>, vector<4x128xf32>, vector<4x128xf32> -> vector<4x128xf32>
    %c1_73 = arith.constant 1 : index
    %c1_74 = arith.constant 1 : index
    %c0_75 = arith.constant 0 : index
    %c0_76 = arith.constant 0 : index
    %84 = vector.load %arg3[%c1_73, %c1_74, %c0_75, %c0_76] : memref<6x3x4x4xf32, #tpu.memory_space<vmem>>, vector<1x1x4x4xf32>
    %85 = vector.shape_cast %84 : vector<1x1x4x4xf32> to vector<4x4xf32>
    %cst_77 = arith.constant dense<0.000000e+00> : vector<4x128xf32>
    %86 = tpu.matmul %85, %75, %cst_77 {dimension_numbers = #tpu.dot_dimension_numbers<[1], [0], [0], [1], [0, 0, 1, 1], [], []>} : vector<4x4xf32>, vector<4x128xf32>, vector<4x128xf32> -> vector<4x128xf32>
    %87 = arith.addf %80, %86 : vector<4x128xf32>
    %c4_78 = arith.constant 4 : index
    %c1_79 = arith.constant 1 : index
    %c0_80 = arith.constant 0 : index
    %c0_81 = arith.constant 0 : index
    %88 = vector.load %arg3[%c4_78, %c1_79, %c0_80, %c0_81] : memref<6x3x4x4xf32, #tpu.memory_space<vmem>>, vector<1x1x4x4xf32>
    %89 = vector.shape_cast %88 : vector<1x1x4x4xf32> to vector<4x4xf32>
    %cst_82 = arith.constant dense<0.000000e+00> : vector<4x128xf32>
    %90 = tpu.matmul %89, %75, %cst_82 {dimension_numbers = #tpu.dot_dimension_numbers<[1], [0], [0], [1], [0, 0, 1, 1], [], []>} : vector<4x4xf32>, vector<4x128xf32>, vector<4x128xf32> -> vector<4x128xf32>
    %91 = arith.addf %83, %90 : vector<4x128xf32>
    %c1_83 = arith.constant 1 : index
    %c2_84 = arith.constant 2 : index
    %c0_85 = arith.constant 0 : index
    %c0_86 = arith.constant 0 : index
    %92 = vector.load %arg3[%c1_83, %c2_84, %c0_85, %c0_86] : memref<6x3x4x4xf32, #tpu.memory_space<vmem>>, vector<1x1x4x4xf32>
    %93 = vector.shape_cast %92 : vector<1x1x4x4xf32> to vector<4x4xf32>
    %cst_87 = arith.constant dense<0.000000e+00> : vector<4x128xf32>
    %94 = tpu.matmul %93, %69, %cst_87 {dimension_numbers = #tpu.dot_dimension_numbers<[1], [0], [0], [1], [0, 0, 1, 1], [], []>} : vector<4x4xf32>, vector<4x128xf32>, vector<4x128xf32> -> vector<4x128xf32>
    %95 = arith.addf %87, %94 : vector<4x128xf32>
    %c4_88 = arith.constant 4 : index
    %c2_89 = arith.constant 2 : index
    %c0_90 = arith.constant 0 : index
    %c0_91 = arith.constant 0 : index
    %96 = vector.load %arg3[%c4_88, %c2_89, %c0_90, %c0_91] : memref<6x3x4x4xf32, #tpu.memory_space<vmem>>, vector<1x1x4x4xf32>
    %97 = vector.shape_cast %96 : vector<1x1x4x4xf32> to vector<4x4xf32>
    %cst_92 = arith.constant dense<0.000000e+00> : vector<4x128xf32>
    %98 = tpu.matmul %97, %69, %cst_92 {dimension_numbers = #tpu.dot_dimension_numbers<[1], [0], [0], [1], [0, 0, 1, 1], [], []>} : vector<4x4xf32>, vector<4x128xf32>, vector<4x128xf32> -> vector<4x128xf32>
    %99 = arith.addf %91, %98 : vector<4x128xf32>
    %c1_93 = arith.constant 1 : index
    %c0_94 = arith.constant 0 : index
    %c0_95 = arith.constant 0 : index
    %100 = vector.load %arg4[%c1_93, %c0_94, %c0_95] : memref<6x4x1xf32, #tpu.memory_space<vmem>>, vector<1x4x1xf32>
    %101 = vector.shape_cast %100 : vector<1x4x1xf32> to vector<4x1xf32>
    %102 = vector.broadcast %101 : vector<4x1xf32> to vector<4x128xf32>
    %103 = arith.addf %95, %102 : vector<4x128xf32>
    %c4_96 = arith.constant 4 : index
    %c0_97 = arith.constant 0 : index
    %c0_98 = arith.constant 0 : index
    %104 = vector.load %arg4[%c4_96, %c0_97, %c0_98] : memref<6x4x1xf32, #tpu.memory_space<vmem>>, vector<1x4x1xf32>
    %105 = vector.shape_cast %104 : vector<1x4x1xf32> to vector<4x1xf32>
    %106 = vector.broadcast %105 : vector<4x1xf32> to vector<4x128xf32>
    %107 = arith.addf %99, %106 : vector<4x128xf32>
    %108 = math.tanh %103 : vector<4x128xf32>
    %cst_99 = arith.constant 5.000000e-01 : f32
    %109 = vector.broadcast %cst_99 : f32 to vector<4x128xf32>
    %110 = arith.mulf %109, %107 : vector<4x128xf32>
    %111 = math.tanh %110 : vector<4x128xf32>
    %cst_100 = arith.constant 5.000000e-01 : f32
    %112 = vector.broadcast %cst_100 : f32 to vector<4x128xf32>
    %113 = arith.mulf %112, %111 : vector<4x128xf32>
    %cst_101 = arith.constant 5.000000e-01 : f32
    %114 = vector.broadcast %cst_101 : f32 to vector<4x128xf32>
    %115 = arith.addf %113, %114 : vector<4x128xf32>
    %116 = arith.mulf %108, %115 : vector<4x128xf32>
    %c4_i32 = arith.constant 4 : i32
    %117 = vector.broadcast %c4_i32 : i32 to vector<1x128xi32>
    %118 = arith.cmpi sge, %3, %117 : vector<1x128xi32>
    %cst_102 = arith.constant 0.000000e+00 : f32
    %119 = vector.shape_cast %118 : vector<1x128xi1> to vector<1x128xi1>
    %120 = vector.broadcast %119 : vector<1x128xi1> to vector<4x128xi1>
    %121 = vector.broadcast %cst_102 : f32 to vector<4x128xf32>
    %122 = arith.select %120, %116, %121 : vector<4x128xi1>, vector<4x128xf32>
    %c0_103 = arith.constant 0 : index
    %c1_104 = arith.constant 1 : index
    %c0_105 = arith.constant 0 : index
    %c0_106 = arith.constant 0 : index
    %123 = vector.load %arg8[%c0_103, %c1_104, %c0_105, %c0_106] : memref<1x3x4x128xf32, #tpu.memory_space<vmem>>, vector<1x1x4x128xf32>
    %124 = vector.shape_cast %123 : vector<1x1x4x128xf32> to vector<4x128xf32>
    %125 = vector.shape_cast %122 : vector<4x128xf32> to vector<1x1x4x128xf32>
    tpu.vector_store %arg8[%c0_103, %c1_104, %c0_105, %c0_106], %125 {strides = array<i32>} : memref<1x3x4x128xf32, #tpu.memory_space<vmem>>, vector<1x1x4x128xf32>,
    %c1_107 = arith.constant 1 : index
    %c0_108 = arith.constant 0 : index
    %c0_109 = arith.constant 0 : index
    %126 = vector.load %arg5[%c1_107, %c0_108, %c0_109] : memref<3x4x4xf32, #tpu.memory_space<vmem>>, vector<1x4x4xf32>
    %127 = vector.shape_cast %126 : vector<1x4x4xf32> to vector<4x4xf32>
    %cst_110 = arith.constant dense<0.000000e+00> : vector<4x128xf32>
    %128 = tpu.matmul %127, %122, %cst_110 {dimension_numbers = #tpu.dot_dimension_numbers<[1], [0], [0], [1], [0, 0, 1, 1], [], []>} : vector<4x4xf32>, vector<4x128xf32>, vector<4x128xf32> -> vector<4x128xf32>
    %c1_111 = arith.constant 1 : index
    %c0_112 = arith.constant 0 : index
    %c0_113 = arith.constant 0 : index
    %129 = vector.load %arg6[%c1_111, %c0_112, %c0_113] : memref<3x4x1xf32, #tpu.memory_space<vmem>>, vector<1x4x1xf32>
    %130 = vector.shape_cast %129 : vector<1x4x1xf32> to vector<4x1xf32>
    %131 = vector.broadcast %130 : vector<4x1xf32> to vector<4x128xf32>
    %132 = arith.addf %128, %131 : vector<4x128xf32>
    %133 = arith.addf %132, %69 : vector<4x128xf32>
    %c0_i32_114 = arith.constant 0 : i32
    %134 = arith.cmpi eq, %arg1, %c0_i32_114 : i32
    %135 = arith.extui %134 : i1 to i32
    %c0_i32_115 = arith.constant 0 : i32
    %136 = arith.cmpi ne, %135, %c0_i32_115 : i32
    scf.if %136 {
      %cst_176 = arith.constant 0.000000e+00 : f32
      %201 = vector.broadcast %cst_176 : f32 to vector<4x128xf32>
      %c0_177 = arith.constant 0 : index
      %c0_178 = arith.constant 0 : index
      %202 = vector.load %arg11[%c0_177, %c0_178] : memref<4x256xf32, #tpu.memory_space<vmem>>, vector<4x128xf32>
      tpu.vector_store %arg11[%c0_177, %c0_178], %201 {strides = array<i32>} : memref<4x256xf32, #tpu.memory_space<vmem>>, vector<4x128xf32>,
    } else {
    }
    %c0_116 = arith.constant 0 : index
    %c128_117 = arith.constant 128 : index
    %137 = vector.load %arg11[%c0_116, %c128_117] : memref<4x256xf32, #tpu.memory_space<vmem>>, vector<4x128xf32>
    tpu.vector_store %arg11[%c0_116, %c128_117], %133 {strides = array<i32>} : memref<4x256xf32, #tpu.memory_space<vmem>>, vector<4x128xf32>,
    %c0_118 = arith.constant 0 : index
    %c120 = arith.constant 120 : index
    %138 = vector.load %arg11[%c0_118, %c120] : memref<4x256xf32, #tpu.memory_space<vmem>>, vector<4x128xf32>
    %c0_119 = arith.constant 0 : index
    %c124_120 = arith.constant 124 : index
    %139 = vector.load %arg11[%c0_119, %c124_120] : memref<4x256xf32, #tpu.memory_space<vmem>>, vector<4x128xf32>
    %140 = vector.extract_strided_slice %133 {offsets = [0, 120], sizes = [4, 8], strides = [1, 1]} : vector<4x128xf32> to vector<4x8xf32>
    %c0_121 = arith.constant 0 : index
    %c120_122 = arith.constant 120 : index
    %141 = vector.load %arg11[%c0_121, %c120_122] : memref<4x256xf32, #tpu.memory_space<vmem>>, vector<4x8xf32>
    tpu.vector_store %arg11[%c0_121, %c120_122], %140 {strides = array<i32>} : memref<4x256xf32, #tpu.memory_space<vmem>>, vector<4x8xf32>,
    %c2_123 = arith.constant 2 : index
    %c0_124 = arith.constant 0 : index
    %c0_125 = arith.constant 0 : index
    %c0_126 = arith.constant 0 : index
    %142 = vector.load %arg3[%c2_123, %c0_124, %c0_125, %c0_126] : memref<6x3x4x4xf32, #tpu.memory_space<vmem>>, vector<1x1x4x4xf32>
    %143 = vector.shape_cast %142 : vector<1x1x4x4xf32> to vector<4x4xf32>
    %cst_127 = arith.constant dense<0.000000e+00> : vector<4x128xf32>
    %144 = tpu.matmul %143, %138, %cst_127 {dimension_numbers = #tpu.dot_dimension_numbers<[1], [0], [0], [1], [0, 0, 1, 1], [], []>} : vector<4x4xf32>, vector<4x128xf32>, vector<4x128xf32> -> vector<4x128xf32>
    %c5 = arith.constant 5 : index
    %c0_128 = arith.constant 0 : index
    %c0_129 = arith.constant 0 : index
    %c0_130 = arith.constant 0 : index
    %145 = vector.load %arg3[%c5, %c0_128, %c0_129, %c0_130] : memref<6x3x4x4xf32, #tpu.memory_space<vmem>>, vector<1x1x4x4xf32>
    %146 = vector.shape_cast %145 : vector<1x1x4x4xf32> to vector<4x4xf32>
    %cst_131 = arith.constant dense<0.000000e+00> : vector<4x128xf32>
    %147 = tpu.matmul %146, %138, %cst_131 {dimension_numbers = #tpu.dot_dimension_numbers<[1], [0], [0], [1], [0, 0, 1, 1], [], []>} : vector<4x4xf32>, vector<4x128xf32>, vector<4x128xf32> -> vector<4x128xf32>
    %c2_132 = arith.constant 2 : index
    %c1_133 = arith.constant 1 : index
    %c0_134 = arith.constant 0 : index
    %c0_135 = arith.constant 0 : index
    %148 = vector.load %arg3[%c2_132, %c1_133, %c0_134, %c0_135] : memref<6x3x4x4xf32, #tpu.memory_space<vmem>>, vector<1x1x4x4xf32>
    %149 = vector.shape_cast %148 : vector<1x1x4x4xf32> to vector<4x4xf32>
    %cst_136 = arith.constant dense<0.000000e+00> : vector<4x128xf32>
    %150 = tpu.matmul %149, %139, %cst_136 {dimension_numbers = #tpu.dot_dimension_numbers<[1], [0], [0], [1], [0, 0, 1, 1], [], []>} : vector<4x4xf32>, vector<4x128xf32>, vector<4x128xf32> -> vector<4x128xf32>
    %151 = arith.addf %144, %150 : vector<4x128xf32>
    %c5_137 = arith.constant 5 : index
    %c1_138 = arith.constant 1 : index
    %c0_139 = arith.constant 0 : index
    %c0_140 = arith.constant 0 : index
    %152 = vector.load %arg3[%c5_137, %c1_138, %c0_139, %c0_140] : memref<6x3x4x4xf32, #tpu.memory_space<vmem>>, vector<1x1x4x4xf32>
    %153 = vector.shape_cast %152 : vector<1x1x4x4xf32> to vector<4x4xf32>
    %cst_141 = arith.constant dense<0.000000e+00> : vector<4x128xf32>
    %154 = tpu.matmul %153, %139, %cst_141 {dimension_numbers = #tpu.dot_dimension_numbers<[1], [0], [0], [1], [0, 0, 1, 1], [], []>} : vector<4x4xf32>, vector<4x128xf32>, vector<4x128xf32> -> vector<4x128xf32>
    %155 = arith.addf %147, %154 : vector<4x128xf32>
    %c2_142 = arith.constant 2 : index
    %c2_143 = arith.constant 2 : index
    %c0_144 = arith.constant 0 : index
    %c0_145 = arith.constant 0 : index
    %156 = vector.load %arg3[%c2_142, %c2_143, %c0_144, %c0_145] : memref<6x3x4x4xf32, #tpu.memory_space<vmem>>, vector<1x1x4x4xf32>
    %157 = vector.shape_cast %156 : vector<1x1x4x4xf32> to vector<4x4xf32>
    %cst_146 = arith.constant dense<0.000000e+00> : vector<4x128xf32>
    %158 = tpu.matmul %157, %133, %cst_146 {dimension_numbers = #tpu.dot_dimension_numbers<[1], [0], [0], [1], [0, 0, 1, 1], [], []>} : vector<4x4xf32>, vector<4x128xf32>, vector<4x128xf32> -> vector<4x128xf32>
    %159 = arith.addf %151, %158 : vector<4x128xf32>
    %c5_147 = arith.constant 5 : index
    %c2_148 = arith.constant 2 : index
    %c0_149 = arith.constant 0 : index
    %c0_150 = arith.constant 0 : index
    %160 = vector.load %arg3[%c5_147, %c2_148, %c0_149, %c0_150] : memref<6x3x4x4xf32, #tpu.memory_space<vmem>>, vector<1x1x4x4xf32>
    %161 = vector.shape_cast %160 : vector<1x1x4x4xf32> to vector<4x4xf32>
    %cst_151 = arith.constant dense<0.000000e+00> : vector<4x128xf32>
    %162 = tpu.matmul %161, %133, %cst_151 {dimension_numbers = #tpu.dot_dimension_numbers<[1], [0], [0], [1], [0, 0, 1, 1], [], []>} : vector<4x4xf32>, vector<4x128xf32>, vector<4x128xf32> -> vector<4x128xf32>
    %163 = arith.addf %155, %162 : vector<4x128xf32>
    %c2_152 = arith.constant 2 : index
    %c0_153 = arith.constant 0 : index
    %c0_154 = arith.constant 0 : index
    %164 = vector.load %arg4[%c2_152, %c0_153, %c0_154] : memref<6x4x1xf32, #tpu.memory_space<vmem>>, vector<1x4x1xf32>
    %165 = vector.shape_cast %164 : vector<1x4x1xf32> to vector<4x1xf32>
    %166 = vector.broadcast %165 : vector<4x1xf32> to vector<4x128xf32>
    %167 = arith.addf %159, %166 : vector<4x128xf32>
    %c5_155 = arith.constant 5 : index
    %c0_156 = arith.constant 0 : index
    %c0_157 = arith.constant 0 : index
    %168 = vector.load %arg4[%c5_155, %c0_156, %c0_157] : memref<6x4x1xf32, #tpu.memory_space<vmem>>, vector<1x4x1xf32>
    %169 = vector.shape_cast %168 : vector<1x4x1xf32> to vector<4x1xf32>
    %170 = vector.broadcast %169 : vector<4x1xf32> to vector<4x128xf32>
    %171 = arith.addf %163, %170 : vector<4x128xf32>
    %172 = math.tanh %167 : vector<4x128xf32>
    %cst_158 = arith.constant 5.000000e-01 : f32
    %173 = vector.broadcast %cst_158 : f32 to vector<4x128xf32>
    %174 = arith.mulf %173, %171 : vector<4x128xf32>
    %175 = math.tanh %174 : vector<4x128xf32>
    %cst_159 = arith.constant 5.000000e-01 : f32
    %176 = vector.broadcast %cst_159 : f32 to vector<4x128xf32>
    %177 = arith.mulf %176, %175 : vector<4x128xf32>
    %cst_160 = arith.constant 5.000000e-01 : f32
    %178 = vector.broadcast %cst_160 : f32 to vector<4x128xf32>
    %179 = arith.addf %177, %178 : vector<4x128xf32>
    %180 = arith.mulf %172, %179 : vector<4x128xf32>
    %c8_i32 = arith.constant 8 : i32
    %181 = vector.broadcast %c8_i32 : i32 to vector<1x128xi32>
    %182 = arith.cmpi sge, %3, %181 : vector<1x128xi32>
    %cst_161 = arith.constant 0.000000e+00 : f32
    %183 = vector.shape_cast %182 : vector<1x128xi1> to vector<1x128xi1>
    %184 = vector.broadcast %183 : vector<1x128xi1> to vector<4x128xi1>
    %185 = vector.broadcast %cst_161 : f32 to vector<4x128xf32>
    %186 = arith.select %184, %180, %185 : vector<4x128xi1>, vector<4x128xf32>
    %c0_162 = arith.constant 0 : index
    %c2_163 = arith.constant 2 : index
    %c0_164 = arith.constant 0 : index
    %c0_165 = arith.constant 0 : index
    %187 = vector.load %arg8[%c0_162, %c2_163, %c0_164, %c0_165] : memref<1x3x4x128xf32, #tpu.memory_space<vmem>>, vector<1x1x4x128xf32>
    %188 = vector.shape_cast %187 : vector<1x1x4x128xf32> to vector<4x128xf32>
    %189 = vector.shape_cast %186 : vector<4x128xf32> to vector<1x1x4x128xf32>
    tpu.vector_store %arg8[%c0_162, %c2_163, %c0_164, %c0_165], %189 {strides = array<i32>} : memref<1x3x4x128xf32, #tpu.memory_space<vmem>>, vector<1x1x4x128xf32>,
    %c2_166 = arith.constant 2 : index
    %c0_167 = arith.constant 0 : index
    %c0_168 = arith.constant 0 : index
    %190 = vector.load %arg5[%c2_166, %c0_167, %c0_168] : memref<3x4x4xf32, #tpu.memory_space<vmem>>, vector<1x4x4xf32>
    %191 = vector.shape_cast %190 : vector<1x4x4xf32> to vector<4x4xf32>
    %cst_169 = arith.constant dense<0.000000e+00> : vector<4x128xf32>
    %192 = tpu.matmul %191, %186, %cst_169 {dimension_numbers = #tpu.dot_dimension_numbers<[1], [0], [0], [1], [0, 0, 1, 1], [], []>} : vector<4x4xf32>, vector<4x128xf32>, vector<4x128xf32> -> vector<4x128xf32>
    %c2_170 = arith.constant 2 : index
    %c0_171 = arith.constant 0 : index
    %c0_172 = arith.constant 0 : index
    %193 = vector.load %arg6[%c2_170, %c0_171, %c0_172] : memref<3x4x1xf32, #tpu.memory_space<vmem>>, vector<1x4x1xf32>
    %194 = vector.shape_cast %193 : vector<1x4x1xf32> to vector<4x1xf32>
    %195 = vector.broadcast %194 : vector<4x1xf32> to vector<4x128xf32>
    %196 = arith.addf %192, %195 : vector<4x128xf32>
    %197 = arith.addf %196, %133 : vector<4x128xf32>
    %c0_173 = arith.constant 0 : index
    %c0_174 = arith.constant 0 : index
    %c0_175 = arith.constant 0 : index
    %198 = vector.load %arg7[%c0_173, %c0_174, %c0_175] : memref<1x4x128xf32, #tpu.memory_space<vmem>>, vector<1x4x128xf32>
    %199 = vector.shape_cast %198 : vector<1x4x128xf32> to vector<4x128xf32>
    %200 = vector.shape_cast %197 : vector<4x128xf32> to vector<1x4x128xf32>
    tpu.vector_store %arg7[%c0_173, %c0_174, %c0_175], %200 {strides = array<i32>} : memref<1x4x128xf32, #tpu.memory_space<vmem>>, vector<1x4x128xf32>,
    return
  }
  func.func @transform_0(%arg0: i32, %arg1: i32) -> (i32, i32, i32) {
    %c0_i32 = arith.constant 0 : i32
    %c0_i32_0 = arith.constant 0 : i32
    return %arg0, %c0_i32, %arg1 : i32, i32, i32
  }
  func.func @transform_1(%arg0: i32, %arg1: i32) -> (i32, i32, i32, i32) {
    %c0_i32 = arith.constant 0 : i32
    %c0_i32_0 = arith.constant 0 : i32
    %c0_i32_1 = arith.constant 0 : i32
    %c0_i32_2 = arith.constant 0 : i32
    %c0_i32_3 = arith.constant 0 : i32
    return %c0_i32, %c0_i32_0, %c0_i32_1, %c0_i32_2 : i32, i32, i32, i32
  }
  func.func @transform_2(%arg0: i32, %arg1: i32) -> (i32, i32, i32) {
    %c0_i32 = arith.constant 0 : i32
    %c0_i32_0 = arith.constant 0 : i32
    %c0_i32_1 = arith.constant 0 : i32
    %c0_i32_2 = arith.constant 0 : i32
    return %c0_i32, %c0_i32_0, %c0_i32_1 : i32, i32, i32
  }
  func.func @transform_3(%arg0: i32, %arg1: i32) -> (i32, i32, i32) {
    %c0_i32 = arith.constant 0 : i32
    %c0_i32_0 = arith.constant 0 : i32
    %c0_i32_1 = arith.constant 0 : i32
    %c0_i32_2 = arith.constant 0 : i32
    return %c0_i32, %c0_i32_0, %c0_i32_1 : i32, i32, i32
  }
  func.func @transform_4(%arg0: i32, %arg1: i32) -> (i32, i32, i32) {
    %c0_i32 = arith.constant 0 : i32
    %c0_i32_0 = arith.constant 0 : i32
    %c0_i32_1 = arith.constant 0 : i32
    %c0_i32_2 = arith.constant 0 : i32
    return %c0_i32, %c0_i32_0, %c0_i32_1 : i32, i32, i32
  }
  func.func @transform_5(%arg0: i32, %arg1: i32) -> (i32, i32, i32) {
    %c0_i32 = arith.constant 0 : i32
    %c0_i32_0 = arith.constant 0 : i32
    return %arg0, %c0_i32, %arg1 : i32, i32, i32
  }
  func.func @transform_6(%arg0: i32, %arg1: i32) -> (i32, i32, i32, i32) {
    %c0_i32 = arith.constant 0 : i32
    %c0_i32_0 = arith.constant 0 : i32
    %c0_i32_1 = arith.constant 0 : i32
    return %arg0, %c0_i32, %c0_i32_0, %arg1 : i32, i32, i32, i32
  }
}

</mosaic_0001>

<llo_original>
// kernel: tpu_custom_call.1
$region0: #{tpu_custom_call.1}
  #allocation0 [shape = 'u32[]', space=smem, size = 0x4, offset = 0x4, fixed_abs, tag = 'smem constant byte address 0x4 - core index']
  #allocation1 [shape = 'u32[144,128]{1,0:T(1,128)}', space=vmem, size = 0x12000, scoped, tag = 'internal scratch']
  #allocation2 [shape = 'f32[4,256]{1,0:T(4,128)}', space=vmem, size = 0x1000, scoped, tag = 'scratch operand']
  #allocation3 [shape = 'f32[4,256]{1,0:T(4,128)}', space=vmem, size = 0x1000, scoped, tag = 'scratch operand']
  #allocation4 [shape = 'f32[4,256]{1,0:T(4,128)}', space=vmem, size = 0x1000, scoped, tag = 'scratch operand']
  %s0 = inlined_call_operand.vmem [shape: f32[2,4,128], index: 0, kind: input, shape index: {}]
  %s1 = inlined_call_operand.vmem [shape: f32[6,3,4,4], index: 1, kind: input, shape index: {}]
  %s2 = inlined_call_operand.vmem [shape: f32[6,4,1], index: 2, kind: input, shape index: {}]
  %s3 = inlined_call_operand.vmem [shape: f32[3,4,4], index: 3, kind: input, shape index: {}]
  %s4 = inlined_call_operand.vmem [shape: f32[3,4,1], index: 4, kind: input, shape index: {}]
  %s5 = inlined_call_operand.hbm [shape: f32[2,4,128], index: 5, kind: output, shape index: {0}]
  %s6 = inlined_call_operand.hbm [shape: f32[2,3,4,128], index: 6, kind: output, shape index: {1}]
  %7 = xla_tuple %s5, %s6
  %s8 = sld [smem:[#allocation0]]
  $region73: #{tpu_custom_call.1} parent=0
    _
  %s10 = ssub.s32 1, %s8
  %s11 = scalar_select 0, %s10, %s8
  $region1: #{tpu_custom_call.1} parent=0
    #allocation5 [shape = 'u8[4096]{0}', space=vmem, size = 0x1000, scoped, tag = 'output window, operand 0']
    #allocation6 [shape = 's32[2]{0}', space=sflag, size = 0x8, scoped, tag = 'scoped memory for tpu_custom_call.1']
    #allocation7 [shape = 'u8[12288]{0}', space=vmem, size = 0x3000, scoped, tag = 'output window, operand 1']
    #allocation8 [shape = 's32[2]{0}', space=sflag, size = 0x8, scoped, tag = 'scoped memory for tpu_custom_call.1']
    %12 = vsyncpa [#allocation6], 0
    %s13 = scalar_lea.sflag [#allocation6], 1
    %14 = vsyncpa %s13, 0
    %15 = vsyncpa [#allocation8], 0
    %s16 = scalar_lea.sflag [#allocation8], 1
    %17 = vsyncpa %s16, 0
    loop: start=0, step=1, limit=4
    $region2: #{tpu_custom_call.1} parent=1 // loop_pre_header
      _
    $region3: #{tpu_custom_call.1} parent=1 // loop_header
      %s19 = sphi 0, %s23
      %p20 = scmp.ge.s32.totalorder %s19, 4
      %s26 = sphi 0, %s38
      %s27 = sphi 0, %s34
      %s28 = sphi 0, %s26
      %s29 = sphi 0, %s27
      %s30 = sphi 0, %s28
      %s31 = sphi 0, %s29
      %s43 = sphi 0, %s45
      %s46 = sphi 0, %s43
      %s47 = sphi 0, %s46
      %s63 = sphi 0, %s47
      %s67 = sphi 0, %s67
      %s69 = sphi 0, %s67
      %s70 = sphi 0, %s69
      %s84 = sphi 0, %s70
      %s88 = sphi 0, %s88
      %s90 = sphi 0, %s88
      %s91 = sphi 0, %s90
      %s105 = sphi 0, %s91
      %s109 = sphi 0, %s109
      %s111 = sphi 0, %s109
      %s112 = sphi 0, %s111
      %s126 = sphi 0, %s112
      %s130 = sphi 0, %s130
      %s132 = sphi 0, %s130
      %s133 = sphi 0, %s132
      %s147 = sphi 0, %s133
      %s155 = sphi 0, %s157
      %s158 = sphi 0, %s155
      %s159 = sphi 0, %s158
      %s175 = sphi 0, %s159
      %s183 = sphi 0, %s185
      %s186 = sphi 0, %s183
      %s187 = sphi 0, %s186
      %s203 = sphi 0, %s187
    $region4: #{tpu_custom_call.1} parent=1 // loop_header_branch
      %22 = sbr.rel (%p20) target = $region8
    $region5: #{tpu_custom_call.1} parent=1 // loop_body
      %s24 = ssub.s32 %s19, 1
      %s25 = ssub.s32 %s19, 2
      %s32 = sadd.s32 1, %s27
      %p33 = scmp.ge.s32.totalorder %s32, 1
      %s34 = scalar_select %p33, 0, %s32
      %s35 = sadd.s32 1, %s26
      %s36 = scalar_select %p33, %s35, %s26
      %p37 = scmp.ge.s32.totalorder %s36, 2
      %s38 = scalar_select %p37, 0, %s36
      %s39 = ssub.s32 %s26, %s38
      %s40 = ssub.s32 %s27, %s34
      %s41 = sor.u32 %s39, %s40
      %p42 = scmp.eq.s32.totalorder %s41, 0
      %s44 = sadd.s32 %s43, 1
      %s45 = scalar_select %p42, %s43, %s44
      %p48 = pneg %p42
      %p49 = scmp.eq.s32.totalorder %s19, 1
      %p50 = por %p48, %p49
      %p51 = scmp.ne.s32.totalorder %s43, %s46
      %p52 = scmp.eq.s32.totalorder %s19, 0
      %p53 = por %p51, %p52
      %p54 = scmp.ne.s32.totalorder %s43, %s46
      %p55 = scmp.eq.s32.totalorder %s24, 1
      %p56 = por %p54, %p55
      %p57 = scmp.ne.s32.totalorder %s46, %s47
      %p58 = scmp.eq.s32.totalorder %s24, 0
      %p59 = por %p57, %p58
      %p60 = scmp.ne.s32.totalorder %s46, %s47
      %p61 = scmp.eq.s32.totalorder %s25, 1
      %p62 = por %p60, %p61
      %p64 = scmp.ne.s32.totalorder %s47, %s63
      %p65 = scmp.eq.s32.totalorder %s25, 0
      %p66 = por %p64, %p65
      %s68 = sadd.s32 %s67, 1
      %p71 = scmp.eq.s32.totalorder %s19, 1
      %p72 = scmp.ne.s32.totalorder %s67, %s69
      %p73 = scmp.eq.s32.totalorder %s19, 0
      %p74 = por %p72, %p73
      %p75 = scmp.ne.s32.totalorder %s67, %s69
      %p76 = scmp.eq.s32.totalorder %s24, 1
      %p77 = por %p75, %p76
      %p78 = scmp.ne.s32.totalorder %s69, %s70
      %p79 = scmp.eq.s32.totalorder %s24, 0
      %p80 = por %p78, %p79
      %p81 = scmp.ne.s32.totalorder %s69, %s70
      %p82 = scmp.eq.s32.totalorder %s25, 1
      %p83 = por %p81, %p82
      %p85 = scmp.ne.s32.totalorder %s70, %s84
      %p86 = scmp.eq.s32.totalorder %s25, 0
      %p87 = por %p85, %p86
      %s89 = sadd.s32 %s88, 1
      %p92 = scmp.eq.s32.totalorder %s19, 1
      %p93 = scmp.ne.s32.totalorder %s88, %s90
      %p94 = scmp.eq.s32.totalorder %s19, 0
      %p95 = por %p93, %p94
      %p96 = scmp.ne.s32.totalorder %s88, %s90
      %p97 = scmp.eq.s32.totalorder %s24, 1
      %p98 = por %p96, %p97
      %p99 = scmp.ne.s32.totalorder %s90, %s91
      %p100 = scmp.eq.s32.totalorder %s24, 0
      %p101 = por %p99, %p100
      %p102 = scmp.ne.s32.totalorder %s90, %s91
      %p103 = scmp.eq.s32.totalorder %s25, 1
      %p104 = por %p102, %p103
      %p106 = scmp.ne.s32.totalorder %s91, %s105
      %p107 = scmp.eq.s32.totalorder %s25, 0
      %p108 = por %p106, %p107
      %s110 = sadd.s32 %s109, 1
      %p113 = scmp.eq.s32.totalorder %s19, 1
      %p114 = scmp.ne.s32.totalorder %s109, %s111
      %p115 = scmp.eq.s32.totalorder %s19, 0
      %p116 = por %p114, %p115
      %p117 = scmp.ne.s32.totalorder %s109, %s111
      %p118 = scmp.eq.s32.totalorder %s24, 1
      %p119 = por %p117, %p118
      %p120 = scmp.ne.s32.totalorder %s111, %s112
      %p121 = scmp.eq.s32.totalorder %s24, 0
      %p122 = por %p120, %p121
      %p123 = scmp.ne.s32.totalorder %s111, %s112
      %p124 = scmp.eq.s32.totalorder %s25, 1
      %p125 = por %p123, %p124
      %p127 = scmp.ne.s32.totalorder %s112, %s126
      %p128 = scmp.eq.s32.totalorder %s25, 0
      %p129 = por %p127, %p128
      %s131 = sadd.s32 %s130, 1
      %p134 = scmp.eq.s32.totalorder %s19, 1
      %p135 = scmp.ne.s32.totalorder %s130, %s132
      %p136 = scmp.eq.s32.totalorder %s19, 0
      %p137 = por %p135, %p136
      %p138 = scmp.ne.s32.totalorder %s130, %s132
      %p139 = scmp.eq.s32.totalorder %s24, 1
      %p140 = por %p138, %p139
      %p141 = scmp.ne.s32.totalorder %s132, %s133
      %p142 = scmp.eq.s32.totalorder %s24, 0
      %p143 = por %p141, %p142
      %p144 = scmp.ne.s32.totalorder %s132, %s133
      %p145 = scmp.eq.s32.totalorder %s25, 1
      %p146 = por %p144, %p145
      %p148 = scmp.ne.s32.totalorder %s133, %s147
      %p149 = scmp.eq.s32.totalorder %s25, 0
      %p150 = por %p148, %p149
      %s151 = ssub.s32 %s26, %s38
      %s152 = ssub.s32 %s27, %s34
      %s153 = sor.u32 %s151, %s152
      %p154 = scmp.eq.s32.totalorder %s153, 0
      %s156 = sadd.s32 %s155, 1
      %s157 = scalar_select %p154, %s155, %s156
      %p160 = pneg %p154
      %p161 = scmp.eq.s32.totalorder %s19, 1
      %p162 = por %p160, %p161
      %p163 = scmp.ne.s32.totalorder %s155, %s158
      %p164 = scmp.eq.s32.totalorder %s19, 0
      %p165 = por %p163, %p164
      %p166 = scmp.ne.s32.totalorder %s155, %s158
      %p167 = scmp.eq.s32.totalorder %s24, 1
      %p168 = por %p166, %p167
      %p169 = scmp.ne.s32.totalorder %s158, %s159
      %p170 = scmp.eq.s32.totalorder %s24, 0
      %p171 = por %p169, %p170
      %p172 = scmp.ne.s32.totalorder %s158, %s159
      %p173 = scmp.eq.s32.totalorder %s25, 1
      %p174 = por %p172, %p173
      %p176 = scmp.ne.s32.totalorder %s159, %s175
      %p177 = scmp.eq.s32.totalorder %s25, 0
      %p178 = por %p176, %p177
      %s179 = ssub.s32 %s26, %s38
      %s180 = ssub.s32 %s27, %s34
      %s181 = sor.u32 %s179, %s180
      %p182 = scmp.eq.s32.totalorder %s181, 0
      %s184 = sadd.s32 %s183, 1
      %s185 = scalar_select %p182, %s183, %s184
      %p188 = pneg %p182
      %p189 = scmp.eq.s32.totalorder %s19, 1
      %p190 = por %p188, %p189
      %p191 = scmp.ne.s32.totalorder %s183, %s186
      %p192 = scmp.eq.s32.totalorder %s19, 0
      %p193 = por %p191, %p192
      %p194 = scmp.ne.s32.totalorder %s183, %s186
      %p195 = scmp.eq.s32.totalorder %s24, 1
      %p196 = por %p194, %p195
      %p197 = scmp.ne.s32.totalorder %s186, %s187
      %p198 = scmp.eq.s32.totalorder %s24, 0
      %p199 = por %p197, %p198
      %p200 = scmp.ne.s32.totalorder %s186, %s187
      %p201 = scmp.eq.s32.totalorder %s25, 1
      %p202 = por %p200, %p201
      %p204 = scmp.ne.s32.totalorder %s187, %s203
      %p205 = scmp.eq.s32.totalorder %s25, 0
      %p206 = por %p204, %p205
      %p207 = scmp.le.s32.totalorder 1, %s19
      %p208 = scmp.lt.s32.totalorder %s19, 3
      %p209 = pnand %p207, %p208
      %p210 = pneg %p209
      // Predicated region
      $region9: #{tpu_custom_call.1} parent=5 // pred_check
        _
      $region10: #{tpu_custom_call.1} parent=5 // pred_check_branch
        %212 = sbr.rel (%p209) target = $region12
      $region11: #{tpu_custom_call.1} parent=5 // pred_region
        %s213 = ssub.s32 %s19, 1
        // Predicated region
        $region13: #{tpu_custom_call.1} parent=11 // pred_check
          %p214 = pneg %p80
        $region14: #{tpu_custom_call.1} parent=11 // pred_check_branch
          %216 = sbr.rel (%p214) target = $region16
        $region15: #{tpu_custom_call.1} parent=11 // pred_region
          _
        $region16: #{tpu_custom_call.1} parent=11 // pred_fallthru
          _
        // Predicated region
        $region17: #{tpu_custom_call.1} parent=11 // pred_check
          %p217 = pneg %p101
        $region18: #{tpu_custom_call.1} parent=11 // pred_check_branch
          %219 = sbr.rel (%p217) target = $region20
        $region19: #{tpu_custom_call.1} parent=11 // pred_region
          _
        $region20: #{tpu_custom_call.1} parent=11 // pred_fallthru
          _
        // Predicated region
        $region21: #{tpu_custom_call.1} parent=11 // pred_check
          %p220 = pneg %p122
        $region22: #{tpu_custom_call.1} parent=11 // pred_check_branch
          %222 = sbr.rel (%p220) target = $region24
        $region23: #{tpu_custom_call.1} parent=11 // pred_region
          _
        $region24: #{tpu_custom_call.1} parent=11 // pred_fallthru
          _
        // Predicated region
        $region25: #{tpu_custom_call.1} parent=11 // pred_check
          %p223 = pneg %p143
        $region26: #{tpu_custom_call.1} parent=11 // pred_check_branch
          %225 = sbr.rel (%p223) target = $region28
        $region27: #{tpu_custom_call.1} parent=11 // pred_region
          _
        $region28: #{tpu_custom_call.1} parent=11 // pred_fallthru
          _
      $region12: #{tpu_custom_call.1} parent=5 // pred_fallthru
        _
      %p226 = scmp.lt.s32.totalorder %s19, 2
      // Predicated region
      $region29: #{tpu_custom_call.1} parent=5 // pred_check
        %p227 = pneg %p226
      $region30: #{tpu_custom_call.1} parent=5 // pred_check_branch
        %229 = sbr.rel (%p227) target = $region32
      $region31: #{tpu_custom_call.1} parent=5 // pred_region
        // Predicated region
        $region33: #{tpu_custom_call.1} parent=31 // pred_check
          %p230 = pneg %p53
        $region34: #{tpu_custom_call.1} parent=31 // pred_check_branch
          %232 = sbr.rel (%p230) target = $region36
        $region35: #{tpu_custom_call.1} parent=31 // pred_region
          %p233 = scmp.lt.s32.totalorder %s26, 1
          %s234 = scalar_select %p233, %s26, 1
          %p235 = scmp.lt.s32.totalorder %s27, 0
          %s236 = scalar_select %p235, %s27, 0
          %s237 = sadd.s32 %s236, %s234
          %s238 = smul.addr %s237, 4
          %s239 = scalar_lea.vmem %s0, %s238
        $region36: #{tpu_custom_call.1} parent=31 // pred_fallthru
          _
      $region32: #{tpu_custom_call.1} parent=5 // pred_fallthru
        _
      %p240 = scmp.le.s32.totalorder 1, %s19
      %p241 = scmp.lt.s32.totalorder %s19, 3
      %p242 = pnand %p240, %p241
      %p243 = pneg %p242
      // Predicated region
      $region37: #{tpu_custom_call.1} parent=5 // pred_check
        _
      $region38: #{tpu_custom_call.1} parent=5 // pred_check_branch
        %245 = sbr.rel (%p242) target = $region40
      $region39: #{tpu_custom_call.1} parent=5 // pred_region
        %s246 = ssub.s32 %s19, 1
        %p247 = scmp.lt.s32.totalorder %s28, 1
        %s248 = scalar_select %p247, %s28, 1
        %p249 = scmp.lt.s32.totalorder %s29, 0
        %s250 = scalar_select %p249, %s29, 0
        %s251 = sadd.s32 %s250, %s248
        %s252 = smul.addr %s251, 4
        %s253 = scalar_lea.vmem %s0, %s252
        %p254 = pneg %p59
        %p255 = pneg %p56
        %p256 = pneg %p80
        %p257 = pneg %p77
        %p258 = pneg %p101
        %p259 = pneg %p98
        %p260 = pneg %p122
        %p261 = pneg %p119
        %p262 = pneg %p143
        %p263 = pneg %p140
        %p264 = pneg %p171
        %p265 = pneg %p168
        %s266 = sand.u32 %s158, 1
        %s267 = scalar_lea.sflag [#allocation6], %s266
        %s268 = sand.u32 %s158, 1
        %s269 = smul.addr %s268, 4
        %s270 = scalar_lea.vmem [#allocation5], %s269
        %p271 = pneg %p199
        %p272 = pneg %p196
        %s273 = sand.u32 %s186, 1
        %s274 = scalar_lea.sflag [#allocation8], %s273
        %s275 = sand.u32 %s186, 1
        %s276 = smul.addr %s275, 12
        %s277 = scalar_lea.vmem [#allocation7], %s276
        %p278 = scmp.lt.s32.totalorder %s28, 1
        %s279 = scalar_select %p278, %s28, 1
        %p280 = scmp.lt.s32.totalorder %s29, 0
        %s281 = scalar_select %p280, %s29, 0
        %s282 = sadd.s32 %s281, %s279
        %s283 = smul.addr %s282, 4
        %s284 = scalar_lea.vmem %s0, %s283
        %v285 = vlaneseq
        %v286 = vand.u32 %v285, 127
        %s287 = smul.u32 %s29, 128
        %v288 = vstv %s287
        %v289 = vadd.s32 %v286, %v288
        %v290 = vld [vmem:[%s284] sm:$0xf]
        %p291 = scmp.eq.s32.totalorder %s29, 0
        // Predicated region
        $region41: #{tpu_custom_call.1} parent=39 // pred_check
          %p292 = pneg %p291
        $region42: #{tpu_custom_call.1} parent=39 // pred_check_branch
          %294 = sbr.rel (%p292) target = $region44
        $region43: #{tpu_custom_call.1} parent=39 // pred_region
          %295 = vst [vmem:[#allocation2] sm:$0xf] 0.0
        $region44: #{tpu_custom_call.1} parent=39 // pred_fallthru
          _
        %296 = vst [vmem:[#allocation2 + $0x4] sm:$0xf] %v290
        %v297 = vld [vmem:[#allocation2] sm:$0xff]
        %vm298 = vcmask 1044464
        %299 = vst.msk [vmem:[#allocation2] sm:$0xf] %vm298, %v290
        %v300 = vld [vmem:[%s1] sm:$0xf]
        %s301 = scalar_lea.vmem %s1, 36
        %v302 = vld [vmem:[%s301] sm:$0xf]
        %s303 = scalar_lea.vmem %s1, 4
        %v304 = vld [vmem:[%s303] sm:$0xf]
        %v306 = vcombine.high %v297, %v297
        %307 = vrot.lane.b32.xlu0 %v297, 1
        %v308 = vpop.permute.xlu0 %307
        %309 = vrot.lane.b32.xlu0 %v306, 1
        %v310 = vpop.permute.xlu0 %309
        %vm311 = vcmask 7168
        %v312 = vsel %vm311, %v308, %v310
        %vm313 = vcmask 31744
        %v315 = vsel %vm313, %v304, 0
        %vm317 = vcmask 1043456
        %v318 = vsel %vm317, %v312, 0
        %320 = vmatprep.subr.mxu0 0.0
        %321 = vmatpush1.msra.mxu0 %v318
        %322 = vmatprep.subr.mxu0 0.0
        %323 = vmatpush1.msra.mxu0 0.0
        %324 = vmatprep.subr.mxu0 0.0
        %325 = vmatpush1.msra.mxu0 0.0
        %326 = vmatprep.subr.mxu0 0.0
        %327 = vmatpush1.msra.mxu0 0.0
        %328 = vmatprep.subr.mxu0 0.0
        %329 = vmatpush1.msra.mxu0 0.0
        %330 = vmatprep.subr.mxu0 0.0
        %331 = vmatpush1.msra.mxu0 0.0
        %332 = vmatprep.subr.mxu0 0.0
        %333 = vmatpush1.msra.mxu0 0.0
        %334 = vmatprep.subr.mxu0 0.0
        %335 = vmatpush1.msra.mxu0 0.0
        %336 = vmatprep.subr.mxu0 0.0
        %337 = vmatpush1.msra.mxu0 0.0
        %338 = vmatprep.subr.mxu0 0.0
        %339 = vmatpush1.msra.mxu0 0.0
        %340 = vmatprep.subr.mxu0 0.0
        %341 = vmatpush1.msra.mxu0 0.0
        %342 = vmatprep.subr.mxu0 0.0
        %343 = vmatpush1.msra.mxu0 0.0
        %344 = vmatprep.subr.mxu0 0.0
        %345 = vmatpush1.msra.mxu0 0.0
        %346 = vmatprep.subr.mxu0 0.0
        %347 = vmatpush1.msra.mxu0 0.0
        %348 = vmatprep.subr.mxu0 0.0
        %349 = vmatpush1.msra.mxu0 0.0
        %350 = vmatprep.subr.mxu0 0.0
        %351 = vmatpush1.msra.mxu0 0.0
        %352 = vmatprep.subr.mxu0 0.0
        %353 = vmatpush1.msra.mxu0 0.0
        %354 = vmatprep.subr.mxu0 0.0
        %355 = vmatpush1.msra.mxu0 0.0
        %356 = vmatprep.subr.mxu0 0.0
        %357 = vmatpush1.msra.mxu0 0.0
        %358 = vmatprep.subr.mxu0 0.0
        %359 = vmatpush1.msra.mxu0 0.0
        %360 = vmatprep.subr.mxu0 0.0
        %361 = vmatpush1.msra.mxu0 0.0
        %362 = vmatprep.subr.mxu0 0.0
        %363 = vmatpush1.msra.mxu0 0.0
        %364 = vmatprep.subr.mxu0 0.0
        %365 = vmatpush1.msra.mxu0 0.0
        %366 = vmatprep.subr.mxu0 0.0
        %367 = vmatpush1.msra.mxu0 0.0
        %368 = vmatprep.subr.mxu0 0.0
        %369 = vmatpush1.msra.mxu0 0.0
        %370 = vmatprep.subr.mxu0 0.0
        %371 = vmatpush1.msra.mxu0 0.0
        %372 = vmatprep.subr.mxu0 0.0
        %373 = vmatpush1.msra.mxu0 0.0
        %374 = vmatprep.subr.mxu0 0.0
        %375 = vmatpush1.msra.mxu0 0.0
        %376 = vmatprep.subr.mxu0 0.0
        %377 = vmatpush1.msra.mxu0 0.0
        %378 = vmatprep.subr.mxu0 0.0
        %379 = vmatpush1.msra.mxu0 0.0
        %380 = vmatprep.subr.mxu0 0.0
        %381 = vmatpush1.msra.mxu0 0.0
        %382 = vmatprep.subr.mxu0 0.0
        %383 = vmatpush1.msra.mxu0 0.0
        %384 = vmatprep.mubr.f32.mxu0 0.0
        %385 = vmatmul.mubr.f32.gmra.mrb[0].mxu0 %v315
        %v386 = vpop.f32.mrb[0].mxu0
        %v387 = vadd.f32 0.0, %v386
        %v388 = vpop.f32.mrb[0].mxu0
        %389 = vdwg.mxu0
        %390 = vrot.lane.b32.xlu0 %v297, 2
        %v391 = vpop.permute.xlu0 %390
        %392 = vrot.lane.b32.xlu0 %v306, 2
        %v393 = vpop.permute.xlu0 %392
        %vm394 = vcmask 15360
        %v395 = vsel %vm394, %v391, %v393
        %v397 = vsel %vm313, %v300, 0
        %v399 = vsel %vm317, %v395, 0
        %401 = vmatprep.subr.mxu0 0.0
        %402 = vmatpush1.msra.mxu0 %v399
        %403 = vmatprep.subr.mxu0 0.0
        %404 = vmatpush1.msra.mxu0 0.0
        %405 = vmatprep.subr.mxu0 0.0
        %406 = vmatpush1.msra.mxu0 0.0
        %407 = vmatprep.subr.mxu0 0.0
        %408 = vmatpush1.msra.mxu0 0.0
        %409 = vmatprep.subr.mxu0 0.0
        %410 = vmatpush1.msra.mxu0 0.0
        %411 = vmatprep.subr.mxu0 0.0
        %412 = vmatpush1.msra.mxu0 0.0
        %413 = vmatprep.subr.mxu0 0.0
        %414 = vmatpush1.msra.mxu0 0.0
        %415 = vmatprep.subr.mxu0 0.0
        %416 = vmatpush1.msra.mxu0 0.0
        %417 = vmatprep.subr.mxu0 0.0
        %418 = vmatpush1.msra.mxu0 0.0
        %419 = vmatprep.subr.mxu0 0.0
        %420 = vmatpush1.msra.mxu0 0.0
        %421 = vmatprep.subr.mxu0 0.0
        %422 = vmatpush1.msra.mxu0 0.0
        %423 = vmatprep.subr.mxu0 0.0
        %424 = vmatpush1.msra.mxu0 0.0
        %425 = vmatprep.subr.mxu0 0.0
        %426 = vmatpush1.msra.mxu0 0.0
        %427 = vmatprep.subr.mxu0 0.0
        %428 = vmatpush1.msra.mxu0 0.0
        %429 = vmatprep.subr.mxu0 0.0
        %430 = vmatpush1.msra.mxu0 0.0
        %431 = vmatprep.subr.mxu0 0.0
        %432 = vmatpush1.msra.mxu0 0.0
        %433 = vmatprep.subr.mxu0 0.0
        %434 = vmatpush1.msra.mxu0 0.0
        %435 = vmatprep.subr.mxu0 0.0
        %436 = vmatpush1.msra.mxu0 0.0
        %437 = vmatprep.subr.mxu0 0.0
        %438 = vmatpush1.msra.mxu0 0.0
        %439 = vmatprep.subr.mxu0 0.0
        %440 = vmatpush1.msra.mxu0 0.0
        %441 = vmatprep.subr.mxu0 0.0
        %442 = vmatpush1.msra.mxu0 0.0
        %443 = vmatprep.subr.mxu0 0.0
        %444 = vmatpush1.msra.mxu0 0.0
        %445 = vmatprep.subr.mxu0 0.0
        %446 = vmatpush1.msra.mxu0 0.0
        %447 = vmatprep.subr.mxu0 0.0
        %448 = vmatpush1.msra.mxu0 0.0
        %449 = vmatprep.subr.mxu0 0.0
        %450 = vmatpush1.msra.mxu0 0.0
        %451 = vmatprep.subr.mxu0 0.0
        %452 = vmatpush1.msra.mxu0 0.0
        %453 = vmatprep.subr.mxu0 0.0
        %454 = vmatpush1.msra.mxu0 0.0
        %455 = vmatprep.subr.mxu0 0.0
        %456 = vmatpush1.msra.mxu0 0.0
        %457 = vmatprep.subr.mxu0 0.0
        %458 = vmatpush1.msra.mxu0 0.0
        %459 = vmatprep.subr.mxu0 0.0
        %460 = vmatpush1.msra.mxu0 0.0
        %461 = vmatprep.subr.mxu0 0.0
        %462 = vmatpush1.msra.mxu0 0.0
        %463 = vmatprep.subr.mxu0 0.0
        %464 = vmatpush1.msra.mxu0 0.0
        %465 = vmatprep.mubr.f32.mxu0 0.0
        %466 = vmatmul.mubr.f32.gmra.mrb[0].mxu0 %v397
        %v467 = vpop.f32.mrb[0].mxu0
        %v468 = vadd.f32 %v387, %v467
        %v469 = vpop.f32.mrb[0].mxu0
        %470 = vdwg.mxu0
        %s471 = scalar_lea.vmem %s1, 40
        %v472 = vld [vmem:[%s471] sm:$0xf]
        %v474 = vsel %vm313, %v472, 0
        %476 = vmatprep.subr.mxu0 0.0
        %477 = vmatpush1.msra.mxu0 %v318
        %478 = vmatprep.subr.mxu0 0.0
        %479 = vmatpush1.msra.mxu0 0.0
        %480 = vmatprep.subr.mxu0 0.0
        %481 = vmatpush1.msra.mxu0 0.0
        %482 = vmatprep.subr.mxu0 0.0
        %483 = vmatpush1.msra.mxu0 0.0
        %484 = vmatprep.subr.mxu0 0.0
        %485 = vmatpush1.msra.mxu0 0.0
        %486 = vmatprep.subr.mxu0 0.0
        %487 = vmatpush1.msra.mxu0 0.0
        %488 = vmatprep.subr.mxu0 0.0
        %489 = vmatpush1.msra.mxu0 0.0
        %490 = vmatprep.subr.mxu0 0.0
        %491 = vmatpush1.msra.mxu0 0.0
        %492 = vmatprep.subr.mxu0 0.0
        %493 = vmatpush1.msra.mxu0 0.0
        %494 = vmatprep.subr.mxu0 0.0
        %495 = vmatpush1.msra.mxu0 0.0
        %496 = vmatprep.subr.mxu0 0.0
        %497 = vmatpush1.msra.mxu0 0.0
        %498 = vmatprep.subr.mxu0 0.0
        %499 = vmatpush1.msra.mxu0 0.0
        %500 = vmatprep.subr.mxu0 0.0
        %501 = vmatpush1.msra.mxu0 0.0
        %502 = vmatprep.subr.mxu0 0.0
        %503 = vmatpush1.msra.mxu0 0.0
        %504 = vmatprep.subr.mxu0 0.0
        %505 = vmatpush1.msra.mxu0 0.0
        %506 = vmatprep.subr.mxu0 0.0
        %507 = vmatpush1.msra.mxu0 0.0
        %508 = vmatprep.subr.mxu0 0.0
        %509 = vmatpush1.msra.mxu0 0.0
        %510 = vmatprep.subr.mxu0 0.0
        %511 = vmatpush1.msra.mxu0 0.0
        %512 = vmatprep.subr.mxu0 0.0
        %513 = vmatpush1.msra.mxu0 0.0
        %514 = vmatprep.subr.mxu0 0.0
        %515 = vmatpush1.msra.mxu0 0.0
        %516 = vmatprep.subr.mxu0 0.0
        %517 = vmatpush1.msra.mxu0 0.0
        %518 = vmatprep.subr.mxu0 0.0
        %519 = vmatpush1.msra.mxu0 0.0
        %520 = vmatprep.subr.mxu0 0.0
        %521 = vmatpush1.msra.mxu0 0.0
        %522 = vmatprep.subr.mxu0 0.0
        %523 = vmatpush1.msra.mxu0 0.0
        %524 = vmatprep.subr.mxu0 0.0
        %525 = vmatpush1.msra.mxu0 0.0
        %526 = vmatprep.subr.mxu0 0.0
        %527 = vmatpush1.msra.mxu0 0.0
        %528 = vmatprep.subr.mxu0 0.0
        %529 = vmatpush1.msra.mxu0 0.0
        %530 = vmatprep.subr.mxu0 0.0
        %531 = vmatpush1.msra.mxu0 0.0
        %532 = vmatprep.subr.mxu0 0.0
        %533 = vmatpush1.msra.mxu0 0.0
        %534 = vmatprep.subr.mxu0 0.0
        %535 = vmatpush1.msra.mxu0 0.0
        %536 = vmatprep.subr.mxu0 0.0
        %537 = vmatpush1.msra.mxu0 0.0
        %538 = vmatprep.subr.mxu0 0.0
        %539 = vmatpush1.msra.mxu0 0.0
        %540 = vmatprep.mubr.f32.mxu0 0.0
        %541 = vmatmul.mubr.f32.gmra.mrb[0].mxu0 %v474
        %v542 = vpop.f32.mrb[0].mxu0
        %v543 = vadd.f32 0.0, %v542
        %v544 = vpop.f32.mrb[0].mxu0
        %545 = vdwg.mxu0
        %v547 = vsel %vm313, %v302, 0
        %549 = vmatprep.subr.mxu0 0.0
        %550 = vmatpush1.msra.mxu0 %v399
        %551 = vmatprep.subr.mxu0 0.0
        %552 = vmatpush1.msra.mxu0 0.0
        %553 = vmatprep.subr.mxu0 0.0
        %554 = vmatpush1.msra.mxu0 0.0
        %555 = vmatprep.subr.mxu0 0.0
        %556 = vmatpush1.msra.mxu0 0.0
        %557 = vmatprep.subr.mxu0 0.0
        %558 = vmatpush1.msra.mxu0 0.0
        %559 = vmatprep.subr.mxu0 0.0
        %560 = vmatpush1.msra.mxu0 0.0
        %561 = vmatprep.subr.mxu0 0.0
        %562 = vmatpush1.msra.mxu0 0.0
        %563 = vmatprep.subr.mxu0 0.0
        %564 = vmatpush1.msra.mxu0 0.0
        %565 = vmatprep.subr.mxu0 0.0
        %566 = vmatpush1.msra.mxu0 0.0
        %567 = vmatprep.subr.mxu0 0.0
        %568 = vmatpush1.msra.mxu0 0.0
        %569 = vmatprep.subr.mxu0 0.0
        %570 = vmatpush1.msra.mxu0 0.0
        %571 = vmatprep.subr.mxu0 0.0
        %572 = vmatpush1.msra.mxu0 0.0
        %573 = vmatprep.subr.mxu0 0.0
        %574 = vmatpush1.msra.mxu0 0.0
        %575 = vmatprep.subr.mxu0 0.0
        %576 = vmatpush1.msra.mxu0 0.0
        %577 = vmatprep.subr.mxu0 0.0
        %578 = vmatpush1.msra.mxu0 0.0
        %579 = vmatprep.subr.mxu0 0.0
        %580 = vmatpush1.msra.mxu0 0.0
        %581 = vmatprep.subr.mxu0 0.0
        %582 = vmatpush1.msra.mxu0 0.0
        %583 = vmatprep.subr.mxu0 0.0
        %584 = vmatpush1.msra.mxu0 0.0
        %585 = vmatprep.subr.mxu0 0.0
        %586 = vmatpush1.msra.mxu0 0.0
        %587 = vmatprep.subr.mxu0 0.0
        %588 = vmatpush1.msra.mxu0 0.0
        %589 = vmatprep.subr.mxu0 0.0
        %590 = vmatpush1.msra.mxu0 0.0
        %591 = vmatprep.subr.mxu0 0.0
        %592 = vmatpush1.msra.mxu0 0.0
        %593 = vmatprep.subr.mxu0 0.0
        %594 = vmatpush1.msra.mxu0 0.0
        %595 = vmatprep.subr.mxu0 0.0
        %596 = vmatpush1.msra.mxu0 0.0
        %597 = vmatprep.subr.mxu0 0.0
        %598 = vmatpush1.msra.mxu0 0.0
        %599 = vmatprep.subr.mxu0 0.0
        %600 = vmatpush1.msra.mxu0 0.0
        %601 = vmatprep.subr.mxu0 0.0
        %602 = vmatpush1.msra.mxu0 0.0
        %603 = vmatprep.subr.mxu0 0.0
        %604 = vmatpush1.msra.mxu0 0.0
        %605 = vmatprep.subr.mxu0 0.0
        %606 = vmatpush1.msra.mxu0 0.0
        %607 = vmatprep.subr.mxu0 0.0
        %608 = vmatpush1.msra.mxu0 0.0
        %609 = vmatprep.subr.mxu0 0.0
        %610 = vmatpush1.msra.mxu0 0.0
        %611 = vmatprep.subr.mxu0 0.0
        %612 = vmatpush1.msra.mxu0 0.0
        %613 = vmatprep.mubr.f32.mxu0 0.0
        %614 = vmatmul.mubr.f32.gmra.mrb[0].mxu0 %v547
        %v615 = vpop.f32.mrb[0].mxu0
        %v616 = vadd.f32 %v543, %v615
        %v617 = vpop.f32.mrb[0].mxu0
        %618 = vdwg.mxu0
        %s619 = scalar_lea.vmem %s1, 8
        %v620 = vld [vmem:[%s619] sm:$0xf]
        %v622 = vsel %vm313, %v620, 0
        %v625 = vsel %vm317, %v290, 0
        %627 = vmatprep.subr.mxu0 0.0
        %628 = vmatpush1.msra.mxu0 %v625
        %629 = vmatprep.subr.mxu0 0.0
        %630 = vmatpush1.msra.mxu0 0.0
        %631 = vmatprep.subr.mxu0 0.0
        %632 = vmatpush1.msra.mxu0 0.0
        %633 = vmatprep.subr.mxu0 0.0
        %634 = vmatpush1.msra.mxu0 0.0
        %635 = vmatprep.subr.mxu0 0.0
        %636 = vmatpush1.msra.mxu0 0.0
        %637 = vmatprep.subr.mxu0 0.0
        %638 = vmatpush1.msra.mxu0 0.0
        %639 = vmatprep.subr.mxu0 0.0
        %640 = vmatpush1.msra.mxu0 0.0
        %641 = vmatprep.subr.mxu0 0.0
        %642 = vmatpush1.msra.mxu0 0.0
        %643 = vmatprep.subr.mxu0 0.0
        %644 = vmatpush1.msra.mxu0 0.0
        %645 = vmatprep.subr.mxu0 0.0
        %646 = vmatpush1.msra.mxu0 0.0
        %647 = vmatprep.subr.mxu0 0.0
        %648 = vmatpush1.msra.mxu0 0.0
        %649 = vmatprep.subr.mxu0 0.0
        %650 = vmatpush1.msra.mxu0 0.0
        %651 = vmatprep.subr.mxu0 0.0
        %652 = vmatpush1.msra.mxu0 0.0
        %653 = vmatprep.subr.mxu0 0.0
        %654 = vmatpush1.msra.mxu0 0.0
        %655 = vmatprep.subr.mxu0 0.0
        %656 = vmatpush1.msra.mxu0 0.0
        %657 = vmatprep.subr.mxu0 0.0
        %658 = vmatpush1.msra.mxu0 0.0
        %659 = vmatprep.subr.mxu0 0.0
        %660 = vmatpush1.msra.mxu0 0.0
        %661 = vmatprep.subr.mxu0 0.0
        %662 = vmatpush1.msra.mxu0 0.0
        %663 = vmatprep.subr.mxu0 0.0
        %664 = vmatpush1.msra.mxu0 0.0
        %665 = vmatprep.subr.mxu0 0.0
        %666 = vmatpush1.msra.mxu0 0.0
        %667 = vmatprep.subr.mxu0 0.0
        %668 = vmatpush1.msra.mxu0 0.0
        %669 = vmatprep.subr.mxu0 0.0
        %670 = vmatpush1.msra.mxu0 0.0
        %671 = vmatprep.subr.mxu0 0.0
        %672 = vmatpush1.msra.mxu0 0.0
        %673 = vmatprep.subr.mxu0 0.0
        %674 = vmatpush1.msra.mxu0 0.0
        %675 = vmatprep.subr.mxu0 0.0
        %676 = vmatpush1.msra.mxu0 0.0
        %677 = vmatprep.subr.mxu0 0.0
        %678 = vmatpush1.msra.mxu0 0.0
        %679 = vmatprep.subr.mxu0 0.0
        %680 = vmatpush1.msra.mxu0 0.0
        %681 = vmatprep.subr.mxu0 0.0
        %682 = vmatpush1.msra.mxu0 0.0
        %683 = vmatprep.subr.mxu0 0.0
        %684 = vmatpush1.msra.mxu0 0.0
        %685 = vmatprep.subr.mxu0 0.0
        %686 = vmatpush1.msra.mxu0 0.0
        %687 = vmatprep.subr.mxu0 0.0
        %688 = vmatpush1.msra.mxu0 0.0
        %689 = vmatprep.subr.mxu0 0.0
        %690 = vmatpush1.msra.mxu0 0.0
        %691 = vmatprep.mubr.f32.mxu0 0.0
        %692 = vmatmul.mubr.f32.gmra.mrb[0].mxu0 %v622
        %v693 = vpop.f32.mrb[0].mxu0
        %v694 = vadd.f32 0.0, %v693
        %v695 = vpop.f32.mrb[0].mxu0
        %696 = vdwg.mxu0
        %v697 = vadd.f32 %v468, %v694
        %s698 = scalar_lea.vmem %s1, 44
        %v699 = vld [vmem:[%s698] sm:$0xf]
        %v701 = vsel %vm313, %v699, 0
        %703 = vmatprep.subr.mxu0 0.0
        %704 = vmatpush1.msra.mxu0 %v625
        %705 = vmatprep.subr.mxu0 0.0
        %706 = vmatpush1.msra.mxu0 0.0
        %707 = vmatprep.subr.mxu0 0.0
        %708 = vmatpush1.msra.mxu0 0.0
        %709 = vmatprep.subr.mxu0 0.0
        %710 = vmatpush1.msra.mxu0 0.0
        %711 = vmatprep.subr.mxu0 0.0
        %712 = vmatpush1.msra.mxu0 0.0
        %713 = vmatprep.subr.mxu0 0.0
        %714 = vmatpush1.msra.mxu0 0.0
        %715 = vmatprep.subr.mxu0 0.0
        %716 = vmatpush1.msra.mxu0 0.0
        %717 = vmatprep.subr.mxu0 0.0
        %718 = vmatpush1.msra.mxu0 0.0
        %719 = vmatprep.subr.mxu0 0.0
        %720 = vmatpush1.msra.mxu0 0.0
        %721 = vmatprep.subr.mxu0 0.0
        %722 = vmatpush1.msra.mxu0 0.0
        %723 = vmatprep.subr.mxu0 0.0
        %724 = vmatpush1.msra.mxu0 0.0
        %725 = vmatprep.subr.mxu0 0.0
        %726 = vmatpush1.msra.mxu0 0.0
        %727 = vmatprep.subr.mxu0 0.0
        %728 = vmatpush1.msra.mxu0 0.0
        %729 = vmatprep.subr.mxu0 0.0
        %730 = vmatpush1.msra.mxu0 0.0
        %731 = vmatprep.subr.mxu0 0.0
        %732 = vmatpush1.msra.mxu0 0.0
        %733 = vmatprep.subr.mxu0 0.0
        %734 = vmatpush1.msra.mxu0 0.0
        %735 = vmatprep.subr.mxu0 0.0
        %736 = vmatpush1.msra.mxu0 0.0
        %737 = vmatprep.subr.mxu0 0.0
        %738 = vmatpush1.msra.mxu0 0.0
        %739 = vmatprep.subr.mxu0 0.0
        %740 = vmatpush1.msra.mxu0 0.0
        %741 = vmatprep.subr.mxu0 0.0
        %742 = vmatpush1.msra.mxu0 0.0
        %743 = vmatprep.subr.mxu0 0.0
        %744 = vmatpush1.msra.mxu0 0.0
        %745 = vmatprep.subr.mxu0 0.0
        %746 = vmatpush1.msra.mxu0 0.0
        %747 = vmatprep.subr.mxu0 0.0
        %748 = vmatpush1.msra.mxu0 0.0
        %749 = vmatprep.subr.mxu0 0.0
        %750 = vmatpush1.msra.mxu0 0.0
        %751 = vmatprep.subr.mxu0 0.0
        %752 = vmatpush1.msra.mxu0 0.0
        %753 = vmatprep.subr.mxu0 0.0
        %754 = vmatpush1.msra.mxu0 0.0
        %755 = vmatprep.subr.mxu0 0.0
        %756 = vmatpush1.msra.mxu0 0.0
        %757 = vmatprep.subr.mxu0 0.0
        %758 = vmatpush1.msra.mxu0 0.0
        %759 = vmatprep.subr.mxu0 0.0
        %760 = vmatpush1.msra.mxu0 0.0
        %761 = vmatprep.subr.mxu0 0.0
        %762 = vmatpush1.msra.mxu0 0.0
        %763 = vmatprep.subr.mxu0 0.0
        %764 = vmatpush1.msra.mxu0 0.0
        %765 = vmatprep.subr.mxu0 0.0
        %766 = vmatpush1.msra.mxu0 0.0
        %767 = vmatprep.mubr.f32.mxu0 0.0
        %768 = vmatmul.mubr.f32.gmra.mrb[0].mxu0 %v701
        %v769 = vpop.f32.mrb[0].mxu0
        %v770 = vadd.f32 0.0, %v769
        %v771 = vpop.f32.mrb[0].mxu0
        %772 = vdwg.mxu0
        %v773 = vadd.f32 %v616, %v770
        %v774 = vld [vmem:[%s2] sm:$0xf]
        %776 = vset.pattern.permute.xlu0 0
        %777 = vperm.xlu0 %776, %v774
        %v778 = vpop.permute.xlu0 %777
        %v780 = vadd.f32 %v697, %v778
        %s781 = scalar_lea.vmem %s2, 12
        %v782 = vld [vmem:[%s781] sm:$0xf]
        %784 = vset.pattern.permute.xlu0 0
        %785 = vperm.xlu0 %784, %v782
        %v786 = vpop.permute.xlu0 %785
        %v788 = vadd.f32 %v773, %v786
        %v789 = vtanh.pop %v780
        %v790 = vmul.f32 %v788, 0.5
        %v791 = vtanh.pop %v790
        %v792 = vmul.f32 %v791, 0.5
        %v793 = vadd.f32 %v792, 0.5
        %v794 = vmul.f32 %v789, %v793
        %vm795 = vcmp.ge.s32.totalorder %v289, 2
        %v796 = vsel %vm795, 1, 0
        %vm797 = vcmp.eq.s32.totalorder %v796, 1
        %v798 = vsel %vm797, %v794, 0.0
        %799 = vst [vmem:[%s277] sm:$0xf] %v798
        %v800 = vld [vmem:[%s3] sm:$0xf]
        %v801 = vld [vmem:[%s4] sm:$0xf]
        %803 = vset.pattern.permute.xlu0 0
        %804 = vperm.xlu0 %803, %v801
        %v805 = vpop.permute.xlu0 %804
        %v808 = vsel %vm313, %v800, 0
        %v811 = vsel %vm317, %v798, 0
        %813 = vmatprep.subr.mxu0 0.0
        %814 = vmatpush1.msra.mxu0 %v811
        %815 = vmatprep.subr.mxu0 0.0
        %816 = vmatpush1.msra.mxu0 0.0
        %817 = vmatprep.subr.mxu0 0.0
        %818 = vmatpush1.msra.mxu0 0.0
        %819 = vmatprep.subr.mxu0 0.0
        %820 = vmatpush1.msra.mxu0 0.0
        %821 = vmatprep.subr.mxu0 0.0
        %822 = vmatpush1.msra.mxu0 0.0
        %823 = vmatprep.subr.mxu0 0.0
        %824 = vmatpush1.msra.mxu0 0.0
        %825 = vmatprep.subr.mxu0 0.0
        %826 = vmatpush1.msra.mxu0 0.0
        %827 = vmatprep.subr.mxu0 0.0
        %828 = vmatpush1.msra.mxu0 0.0
        %829 = vmatprep.subr.mxu0 0.0
        %830 = vmatpush1.msra.mxu0 0.0
        %831 = vmatprep.subr.mxu0 0.0
        %832 = vmatpush1.msra.mxu0 0.0
        %833 = vmatprep.subr.mxu0 0.0
        %834 = vmatpush1.msra.mxu0 0.0
        %835 = vmatprep.subr.mxu0 0.0
        %836 = vmatpush1.msra.mxu0 0.0
        %837 = vmatprep.subr.mxu0 0.0
        %838 = vmatpush1.msra.mxu0 0.0
        %839 = vmatprep.subr.mxu0 0.0
        %840 = vmatpush1.msra.mxu0 0.0
        %841 = vmatprep.subr.mxu0 0.0
        %842 = vmatpush1.msra.mxu0 0.0
        %843 = vmatprep.subr.mxu0 0.0
        %844 = vmatpush1.msra.mxu0 0.0
        %845 = vmatprep.subr.mxu0 0.0
        %846 = vmatpush1.msra.mxu0 0.0
        %847 = vmatprep.subr.mxu0 0.0
        %848 = vmatpush1.msra.mxu0 0.0
        %849 = vmatprep.subr.mxu0 0.0
        %850 = vmatpush1.msra.mxu0 0.0
        %851 = vmatprep.subr.mxu0 0.0
        %852 = vmatpush1.msra.mxu0 0.0
        %853 = vmatprep.subr.mxu0 0.0
        %854 = vmatpush1.msra.mxu0 0.0
        %855 = vmatprep.subr.mxu0 0.0
        %856 = vmatpush1.msra.mxu0 0.0
        %857 = vmatprep.subr.mxu0 0.0
        %858 = vmatpush1.msra.mxu0 0.0
        %859 = vmatprep.subr.mxu0 0.0
        %860 = vmatpush1.msra.mxu0 0.0
        %861 = vmatprep.subr.mxu0 0.0
        %862 = vmatpush1.msra.mxu0 0.0
        %863 = vmatprep.subr.mxu0 0.0
        %864 = vmatpush1.msra.mxu0 0.0
        %865 = vmatprep.subr.mxu0 0.0
        %866 = vmatpush1.msra.mxu0 0.0
        %867 = vmatprep.subr.mxu0 0.0
        %868 = vmatpush1.msra.mxu0 0.0
        %869 = vmatprep.subr.mxu0 0.0
        %870 = vmatpush1.msra.mxu0 0.0
        %871 = vmatprep.subr.mxu0 0.0
        %872 = vmatpush1.msra.mxu0 0.0
        %873 = vmatprep.subr.mxu0 0.0
        %874 = vmatpush1.msra.mxu0 0.0
        %875 = vmatprep.subr.mxu0 0.0
        %876 = vmatpush1.msra.mxu0 0.0
        %877 = vmatprep.mubr.f32.mxu0 0.0
        %878 = vmatmul.mubr.f32.gmra.mrb[0].mxu0 %v808
        %v879 = vpop.f32.mrb[0].mxu0
        %v880 = vadd.f32 %v805, %v879
        %v881 = vpop.f32.mrb[0].mxu0
        %882 = vdwg.mxu0
        %v883 = vadd.f32 %v880, %v290
        // Predicated region
        $region45: #{tpu_custom_call.1} parent=39 // pred_check
          %p884 = pneg %p291
        $region46: #{tpu_custom_call.1} parent=39 // pred_check_branch
          %886 = sbr.rel (%p884) target = $region48
        $region47: #{tpu_custom_call.1} parent=39 // pred_region
          %887 = vst [vmem:[#allocation3] sm:$0xf] 0.0
        $region48: #{tpu_custom_call.1} parent=39 // pred_fallthru
          _
        %888 = vst [vmem:[#allocation3 + $0x4] sm:$0xf] %v883
        %v889 = vld [vmem:[#allocation3] sm:$0xff]
        %vm890 = vcmask 1044448
        %891 = vst.msk [vmem:[#allocation3] sm:$0xf] %vm890, %v883
        %s892 = scalar_lea.vmem %s1, 12
        %v893 = vld [vmem:[%s892] sm:$0xf]
        %s894 = scalar_lea.vmem %s1, 48
        %v895 = vld [vmem:[%s894] sm:$0xf]
        %s896 = scalar_lea.vmem %s1, 16
        %v897 = vld [vmem:[%s896] sm:$0xf]
        %v899 = vcombine.high %v889, %v889
        %900 = vrot.lane.b32.xlu0 %v889, 2
        %v901 = vpop.permute.xlu0 %900
        %902 = vrot.lane.b32.xlu0 %v899, 2
        %v903 = vpop.permute.xlu0 %902
        %v904 = vsel %vm394, %v901, %v903
        %v906 = vsel %vm313, %v897, 0
        %v908 = vsel %vm317, %v904, 0
        %910 = vmatprep.subr.mxu0 0.0
        %911 = vmatpush1.msra.mxu0 %v908
        %912 = vmatprep.subr.mxu0 0.0
        %913 = vmatpush1.msra.mxu0 0.0
        %914 = vmatprep.subr.mxu0 0.0
        %915 = vmatpush1.msra.mxu0 0.0
        %916 = vmatprep.subr.mxu0 0.0
        %917 = vmatpush1.msra.mxu0 0.0
        %918 = vmatprep.subr.mxu0 0.0
        %919 = vmatpush1.msra.mxu0 0.0
        %920 = vmatprep.subr.mxu0 0.0
        %921 = vmatpush1.msra.mxu0 0.0
        %922 = vmatprep.subr.mxu0 0.0
        %923 = vmatpush1.msra.mxu0 0.0
        %924 = vmatprep.subr.mxu0 0.0
        %925 = vmatpush1.msra.mxu0 0.0
        %926 = vmatprep.subr.mxu0 0.0
        %927 = vmatpush1.msra.mxu0 0.0
        %928 = vmatprep.subr.mxu0 0.0
        %929 = vmatpush1.msra.mxu0 0.0
        %930 = vmatprep.subr.mxu0 0.0
        %931 = vmatpush1.msra.mxu0 0.0
        %932 = vmatprep.subr.mxu0 0.0
        %933 = vmatpush1.msra.mxu0 0.0
        %934 = vmatprep.subr.mxu0 0.0
        %935 = vmatpush1.msra.mxu0 0.0
        %936 = vmatprep.subr.mxu0 0.0
        %937 = vmatpush1.msra.mxu0 0.0
        %938 = vmatprep.subr.mxu0 0.0
        %939 = vmatpush1.msra.mxu0 0.0
        %940 = vmatprep.subr.mxu0 0.0
        %941 = vmatpush1.msra.mxu0 0.0
        %942 = vmatprep.subr.mxu0 0.0
        %943 = vmatpush1.msra.mxu0 0.0
        %944 = vmatprep.subr.mxu0 0.0
        %945 = vmatpush1.msra.mxu0 0.0
        %946 = vmatprep.subr.mxu0 0.0
        %947 = vmatpush1.msra.mxu0 0.0
        %948 = vmatprep.subr.mxu0 0.0
        %949 = vmatpush1.msra.mxu0 0.0
        %950 = vmatprep.subr.mxu0 0.0
        %951 = vmatpush1.msra.mxu0 0.0
        %952 = vmatprep.subr.mxu0 0.0
        %953 = vmatpush1.msra.mxu0 0.0
        %954 = vmatprep.subr.mxu0 0.0
        %955 = vmatpush1.msra.mxu0 0.0
        %956 = vmatprep.subr.mxu0 0.0
        %957 = vmatpush1.msra.mxu0 0.0
        %958 = vmatprep.subr.mxu0 0.0
        %959 = vmatpush1.msra.mxu0 0.0
        %960 = vmatprep.subr.mxu0 0.0
        %961 = vmatpush1.msra.mxu0 0.0
        %962 = vmatprep.subr.mxu0 0.0
        %963 = vmatpush1.msra.mxu0 0.0
        %964 = vmatprep.subr.mxu0 0.0
        %965 = vmatpush1.msra.mxu0 0.0
        %966 = vmatprep.subr.mxu0 0.0
        %967 = vmatpush1.msra.mxu0 0.0
        %968 = vmatprep.subr.mxu0 0.0
        %969 = vmatpush1.msra.mxu0 0.0
        %970 = vmatprep.subr.mxu0 0.0
        %971 = vmatpush1.msra.mxu0 0.0
        %972 = vmatprep.subr.mxu0 0.0
        %973 = vmatpush1.msra.mxu0 0.0
        %974 = vmatprep.mubr.f32.mxu0 0.0
        %975 = vmatmul.mubr.f32.gmra.mrb[0].mxu0 %v906
        %v976 = vpop.f32.mrb[0].mxu0
        %v977 = vadd.f32 0.0, %v976
        %v978 = vpop.f32.mrb[0].mxu0
        %979 = vdwg.mxu0
        %980 = vrot.lane.b32.xlu0 %v889, 4
        %v981 = vpop.permute.xlu0 %980
        %982 = vrot.lane.b32.xlu0 %v899, 4
        %v983 = vpop.permute.xlu0 %982
        %v984 = vsel %vm313, %v981, %v983
        %v986 = vsel %vm313, %v893, 0
        %v988 = vsel %vm317, %v984, 0
        %990 = vmatprep.subr.mxu0 0.0
        %991 = vmatpush1.msra.mxu0 %v988
        %992 = vmatprep.subr.mxu0 0.0
        %993 = vmatpush1.msra.mxu0 0.0
        %994 = vmatprep.subr.mxu0 0.0
        %995 = vmatpush1.msra.mxu0 0.0
        %996 = vmatprep.subr.mxu0 0.0
        %997 = vmatpush1.msra.mxu0 0.0
        %998 = vmatprep.subr.mxu0 0.0
        %999 = vmatpush1.msra.mxu0 0.0
        %1000 = vmatprep.subr.mxu0 0.0
        %1001 = vmatpush1.msra.mxu0 0.0
        %1002 = vmatprep.subr.mxu0 0.0
        %1003 = vmatpush1.msra.mxu0 0.0
        %1004 = vmatprep.subr.mxu0 0.0
        %1005 = vmatpush1.msra.mxu0 0.0
        %1006 = vmatprep.subr.mxu0 0.0
        %1007 = vmatpush1.msra.mxu0 0.0
        %1008 = vmatprep.subr.mxu0 0.0
        %1009 = vmatpush1.msra.mxu0 0.0
        %1010 = vmatprep.subr.mxu0 0.0
        %1011 = vmatpush1.msra.mxu0 0.0
        %1012 = vmatprep.subr.mxu0 0.0
        %1013 = vmatpush1.msra.mxu0 0.0
        %1014 = vmatprep.subr.mxu0 0.0
        %1015 = vmatpush1.msra.mxu0 0.0
        %1016 = vmatprep.subr.mxu0 0.0
        %1017 = vmatpush1.msra.mxu0 0.0
        %1018 = vmatprep.subr.mxu0 0.0
        %1019 = vmatpush1.msra.mxu0 0.0
        %1020 = vmatprep.subr.mxu0 0.0
        %1021 = vmatpush1.msra.mxu0 0.0
        %1022 = vmatprep.subr.mxu0 0.0
        %1023 = vmatpush1.msra.mxu0 0.0
        %1024 = vmatprep.subr.mxu0 0.0
        %1025 = vmatpush1.msra.mxu0 0.0
        %1026 = vmatprep.subr.mxu0 0.0
        %1027 = vmatpush1.msra.mxu0 0.0
        %1028 = vmatprep.subr.mxu0 0.0
        %1029 = vmatpush1.msra.mxu0 0.0
        %1030 = vmatprep.subr.mxu0 0.0
        %1031 = vmatpush1.msra.mxu0 0.0
        %1032 = vmatprep.subr.mxu0 0.0
        %1033 = vmatpush1.msra.mxu0 0.0
        %1034 = vmatprep.subr.mxu0 0.0
        %1035 = vmatpush1.msra.mxu0 0.0
        %1036 = vmatprep.subr.mxu0 0.0
        %1037 = vmatpush1.msra.mxu0 0.0
        %1038 = vmatprep.subr.mxu0 0.0
        %1039 = vmatpush1.msra.mxu0 0.0
        %1040 = vmatprep.subr.mxu0 0.0
        %1041 = vmatpush1.msra.mxu0 0.0
        %1042 = vmatprep.subr.mxu0 0.0
        %1043 = vmatpush1.msra.mxu0 0.0
        %1044 = vmatprep.subr.mxu0 0.0
        %1045 = vmatpush1.msra.mxu0 0.0
        %1046 = vmatprep.subr.mxu0 0.0
        %1047 = vmatpush1.msra.mxu0 0.0
        %1048 = vmatprep.subr.mxu0 0.0
        %1049 = vmatpush1.msra.mxu0 0.0
        %1050 = vmatprep.subr.mxu0 0.0
        %1051 = vmatpush1.msra.mxu0 0.0
        %1052 = vmatprep.subr.mxu0 0.0
        %1053 = vmatpush1.msra.mxu0 0.0
        %1054 = vmatprep.mubr.f32.mxu0 0.0
        %1055 = vmatmul.mubr.f32.gmra.mrb[0].mxu0 %v986
        %v1056 = vpop.f32.mrb[0].mxu0
        %v1057 = vadd.f32 %v977, %v1056
        %v1058 = vpop.f32.mrb[0].mxu0
        %1059 = vdwg.mxu0
        %s1060 = scalar_lea.vmem %s1, 52
        %v1061 = vld [vmem:[%s1060] sm:$0xf]
        %v1063 = vsel %vm313, %v1061, 0
        %1065 = vmatprep.subr.mxu0 0.0
        %1066 = vmatpush1.msra.mxu0 %v908
        %1067 = vmatprep.subr.mxu0 0.0
        %1068 = vmatpush1.msra.mxu0 0.0
        %1069 = vmatprep.subr.mxu0 0.0
        %1070 = vmatpush1.msra.mxu0 0.0
        %1071 = vmatprep.subr.mxu0 0.0
        %1072 = vmatpush1.msra.mxu0 0.0
        %1073 = vmatprep.subr.mxu0 0.0
        %1074 = vmatpush1.msra.mxu0 0.0
        %1075 = vmatprep.subr.mxu0 0.0
        %1076 = vmatpush1.msra.mxu0 0.0
        %1077 = vmatprep.subr.mxu0 0.0
        %1078 = vmatpush1.msra.mxu0 0.0
        %1079 = vmatprep.subr.mxu0 0.0
        %1080 = vmatpush1.msra.mxu0 0.0
        %1081 = vmatprep.subr.mxu0 0.0
        %1082 = vmatpush1.msra.mxu0 0.0
        %1083 = vmatprep.subr.mxu0 0.0
        %1084 = vmatpush1.msra.mxu0 0.0
        %1085 = vmatprep.subr.mxu0 0.0
        %1086 = vmatpush1.msra.mxu0 0.0
        %1087 = vmatprep.subr.mxu0 0.0
        %1088 = vmatpush1.msra.mxu0 0.0
        %1089 = vmatprep.subr.mxu0 0.0
        %1090 = vmatpush1.msra.mxu0 0.0
        %1091 = vmatprep.subr.mxu0 0.0
        %1092 = vmatpush1.msra.mxu0 0.0
        %1093 = vmatprep.subr.mxu0 0.0
        %1094 = vmatpush1.msra.mxu0 0.0
        %1095 = vmatprep.subr.mxu0 0.0
        %1096 = vmatpush1.msra.mxu0 0.0
        %1097 = vmatprep.subr.mxu0 0.0
        %1098 = vmatpush1.msra.mxu0 0.0
        %1099 = vmatprep.subr.mxu0 0.0
        %1100 = vmatpush1.msra.mxu0 0.0
        %1101 = vmatprep.subr.mxu0 0.0
        %1102 = vmatpush1.msra.mxu0 0.0
        %1103 = vmatprep.subr.mxu0 0.0
        %1104 = vmatpush1.msra.mxu0 0.0
        %1105 = vmatprep.subr.mxu0 0.0
        %1106 = vmatpush1.msra.mxu0 0.0
        %1107 = vmatprep.subr.mxu0 0.0
        %1108 = vmatpush1.msra.mxu0 0.0
        %1109 = vmatprep.subr.mxu0 0.0
        %1110 = vmatpush1.msra.mxu0 0.0
        %1111 = vmatprep.subr.mxu0 0.0
        %1112 = vmatpush1.msra.mxu0 0.0
        %1113 = vmatprep.subr.mxu0 0.0
        %1114 = vmatpush1.msra.mxu0 0.0
        %1115 = vmatprep.subr.mxu0 0.0
        %1116 = vmatpush1.msra.mxu0 0.0
        %1117 = vmatprep.subr.mxu0 0.0
        %1118 = vmatpush1.msra.mxu0 0.0
        %1119 = vmatprep.subr.mxu0 0.0
        %1120 = vmatpush1.msra.mxu0 0.0
        %1121 = vmatprep.subr.mxu0 0.0
        %1122 = vmatpush1.msra.mxu0 0.0
        %1123 = vmatprep.subr.mxu0 0.0
        %1124 = vmatpush1.msra.mxu0 0.0
        %1125 = vmatprep.subr.mxu0 0.0
        %1126 = vmatpush1.msra.mxu0 0.0
        %1127 = vmatprep.subr.mxu0 0.0
        %1128 = vmatpush1.msra.mxu0 0.0
        %1129 = vmatprep.mubr.f32.mxu0 0.0
        %1130 = vmatmul.mubr.f32.gmra.mrb[0].mxu0 %v1063
        %v1131 = vpop.f32.mrb[0].mxu0
        %v1132 = vadd.f32 0.0, %v1131
        %v1133 = vpop.f32.mrb[0].mxu0
        %1134 = vdwg.mxu0
        %v1136 = vsel %vm313, %v895, 0
        %1138 = vmatprep.subr.mxu0 0.0
        %1139 = vmatpush1.msra.mxu0 %v988
        %1140 = vmatprep.subr.mxu0 0.0
        %1141 = vmatpush1.msra.mxu0 0.0
        %1142 = vmatprep.subr.mxu0 0.0
        %1143 = vmatpush1.msra.mxu0 0.0
        %1144 = vmatprep.subr.mxu0 0.0
        %1145 = vmatpush1.msra.mxu0 0.0
        %1146 = vmatprep.subr.mxu0 0.0
        %1147 = vmatpush1.msra.mxu0 0.0
        %1148 = vmatprep.subr.mxu0 0.0
        %1149 = vmatpush1.msra.mxu0 0.0
        %1150 = vmatprep.subr.mxu0 0.0
        %1151 = vmatpush1.msra.mxu0 0.0
        %1152 = vmatprep.subr.mxu0 0.0
        %1153 = vmatpush1.msra.mxu0 0.0
        %1154 = vmatprep.subr.mxu0 0.0
        %1155 = vmatpush1.msra.mxu0 0.0
        %1156 = vmatprep.subr.mxu0 0.0
        %1157 = vmatpush1.msra.mxu0 0.0
        %1158 = vmatprep.subr.mxu0 0.0
        %1159 = vmatpush1.msra.mxu0 0.0
        %1160 = vmatprep.subr.mxu0 0.0
        %1161 = vmatpush1.msra.mxu0 0.0
        %1162 = vmatprep.subr.mxu0 0.0
        %1163 = vmatpush1.msra.mxu0 0.0
        %1164 = vmatprep.subr.mxu0 0.0
        %1165 = vmatpush1.msra.mxu0 0.0
        %1166 = vmatprep.subr.mxu0 0.0
        %1167 = vmatpush1.msra.mxu0 0.0
        %1168 = vmatprep.subr.mxu0 0.0
        %1169 = vmatpush1.msra.mxu0 0.0
        %1170 = vmatprep.subr.mxu0 0.0
        %1171 = vmatpush1.msra.mxu0 0.0
        %1172 = vmatprep.subr.mxu0 0.0
        %1173 = vmatpush1.msra.mxu0 0.0
        %1174 = vmatprep.subr.mxu0 0.0
        %1175 = vmatpush1.msra.mxu0 0.0
        %1176 = vmatprep.subr.mxu0 0.0
        %1177 = vmatpush1.msra.mxu0 0.0
        %1178 = vmatprep.subr.mxu0 0.0
        %1179 = vmatpush1.msra.mxu0 0.0
        %1180 = vmatprep.subr.mxu0 0.0
        %1181 = vmatpush1.msra.mxu0 0.0
        %1182 = vmatprep.subr.mxu0 0.0
        %1183 = vmatpush1.msra.mxu0 0.0
        %1184 = vmatprep.subr.mxu0 0.0
        %1185 = vmatpush1.msra.mxu0 0.0
        %1186 = vmatprep.subr.mxu0 0.0
        %1187 = vmatpush1.msra.mxu0 0.0
        %1188 = vmatprep.subr.mxu0 0.0
        %1189 = vmatpush1.msra.mxu0 0.0
        %1190 = vmatprep.subr.mxu0 0.0
        %1191 = vmatpush1.msra.mxu0 0.0
        %1192 = vmatprep.subr.mxu0 0.0
        %1193 = vmatpush1.msra.mxu0 0.0
        %1194 = vmatprep.subr.mxu0 0.0
        %1195 = vmatpush1.msra.mxu0 0.0
        %1196 = vmatprep.subr.mxu0 0.0
        %1197 = vmatpush1.msra.mxu0 0.0
        %1198 = vmatprep.subr.mxu0 0.0
        %1199 = vmatpush1.msra.mxu0 0.0
        %1200 = vmatprep.subr.mxu0 0.0
        %1201 = vmatpush1.msra.mxu0 0.0
        %1202 = vmatprep.mubr.f32.mxu0 0.0
        %1203 = vmatmul.mubr.f32.gmra.mrb[0].mxu0 %v1136
        %v1204 = vpop.f32.mrb[0].mxu0
        %v1205 = vadd.f32 %v1132, %v1204
        %v1206 = vpop.f32.mrb[0].mxu0
        %1207 = vdwg.mxu0
        %s1208 = scalar_lea.vmem %s1, 20
        %v1209 = vld [vmem:[%s1208] sm:$0xf]
        %v1211 = vsel %vm313, %v1209, 0
        %v1214 = vsel %vm317, %v883, 0
        %1216 = vmatprep.subr.mxu0 0.0
        %1217 = vmatpush1.msra.mxu0 %v1214
        %1218 = vmatprep.subr.mxu0 0.0
        %1219 = vmatpush1.msra.mxu0 0.0
        %1220 = vmatprep.subr.mxu0 0.0
        %1221 = vmatpush1.msra.mxu0 0.0
        %1222 = vmatprep.subr.mxu0 0.0
        %1223 = vmatpush1.msra.mxu0 0.0
        %1224 = vmatprep.subr.mxu0 0.0
        %1225 = vmatpush1.msra.mxu0 0.0
        %1226 = vmatprep.subr.mxu0 0.0
        %1227 = vmatpush1.msra.mxu0 0.0
        %1228 = vmatprep.subr.mxu0 0.0
        %1229 = vmatpush1.msra.mxu0 0.0
        %1230 = vmatprep.subr.mxu0 0.0
        %1231 = vmatpush1.msra.mxu0 0.0
        %1232 = vmatprep.subr.mxu0 0.0
        %1233 = vmatpush1.msra.mxu0 0.0
        %1234 = vmatprep.subr.mxu0 0.0
        %1235 = vmatpush1.msra.mxu0 0.0
        %1236 = vmatprep.subr.mxu0 0.0
        %1237 = vmatpush1.msra.mxu0 0.0
        %1238 = vmatprep.subr.mxu0 0.0
        %1239 = vmatpush1.msra.mxu0 0.0
        %1240 = vmatprep.subr.mxu0 0.0
        %1241 = vmatpush1.msra.mxu0 0.0
        %1242 = vmatprep.subr.mxu0 0.0
        %1243 = vmatpush1.msra.mxu0 0.0
        %1244 = vmatprep.subr.mxu0 0.0
        %1245 = vmatpush1.msra.mxu0 0.0
        %1246 = vmatprep.subr.mxu0 0.0
        %1247 = vmatpush1.msra.mxu0 0.0
        %1248 = vmatprep.subr.mxu0 0.0
        %1249 = vmatpush1.msra.mxu0 0.0
        %1250 = vmatprep.subr.mxu0 0.0
        %1251 = vmatpush1.msra.mxu0 0.0
        %1252 = vmatprep.subr.mxu0 0.0
        %1253 = vmatpush1.msra.mxu0 0.0
        %1254 = vmatprep.subr.mxu0 0.0
        %1255 = vmatpush1.msra.mxu0 0.0
        %1256 = vmatprep.subr.mxu0 0.0
        %1257 = vmatpush1.msra.mxu0 0.0
        %1258 = vmatprep.subr.mxu0 0.0
        %1259 = vmatpush1.msra.mxu0 0.0
        %1260 = vmatprep.subr.mxu0 0.0
        %1261 = vmatpush1.msra.mxu0 0.0
        %1262 = vmatprep.subr.mxu0 0.0
        %1263 = vmatpush1.msra.mxu0 0.0
        %1264 = vmatprep.subr.mxu0 0.0
        %1265 = vmatpush1.msra.mxu0 0.0
        %1266 = vmatprep.subr.mxu0 0.0
        %1267 = vmatpush1.msra.mxu0 0.0
        %1268 = vmatprep.subr.mxu0 0.0
        %1269 = vmatpush1.msra.mxu0 0.0
        %1270 = vmatprep.subr.mxu0 0.0
        %1271 = vmatpush1.msra.mxu0 0.0
        %1272 = vmatprep.subr.mxu0 0.0
        %1273 = vmatpush1.msra.mxu0 0.0
        %1274 = vmatprep.subr.mxu0 0.0
        %1275 = vmatpush1.msra.mxu0 0.0
        %1276 = vmatprep.subr.mxu0 0.0
        %1277 = vmatpush1.msra.mxu0 0.0
        %1278 = vmatprep.subr.mxu0 0.0
        %1279 = vmatpush1.msra.mxu0 0.0
        %1280 = vmatprep.mubr.f32.mxu0 0.0
        %1281 = vmatmul.mubr.f32.gmra.mrb[0].mxu0 %v1211
        %v1282 = vpop.f32.mrb[0].mxu0
        %v1283 = vadd.f32 0.0, %v1282
        %v1284 = vpop.f32.mrb[0].mxu0
        %1285 = vdwg.mxu0
        %v1286 = vadd.f32 %v1057, %v1283
        %s1287 = scalar_lea.vmem %s1, 56
        %v1288 = vld [vmem:[%s1287] sm:$0xf]
        %v1290 = vsel %vm313, %v1288, 0
        %1292 = vmatprep.subr.mxu0 0.0
        %1293 = vmatpush1.msra.mxu0 %v1214
        %1294 = vmatprep.subr.mxu0 0.0
        %1295 = vmatpush1.msra.mxu0 0.0
        %1296 = vmatprep.subr.mxu0 0.0
        %1297 = vmatpush1.msra.mxu0 0.0
        %1298 = vmatprep.subr.mxu0 0.0
        %1299 = vmatpush1.msra.mxu0 0.0
        %1300 = vmatprep.subr.mxu0 0.0
        %1301 = vmatpush1.msra.mxu0 0.0
        %1302 = vmatprep.subr.mxu0 0.0
        %1303 = vmatpush1.msra.mxu0 0.0
        %1304 = vmatprep.subr.mxu0 0.0
        %1305 = vmatpush1.msra.mxu0 0.0
        %1306 = vmatprep.subr.mxu0 0.0
        %1307 = vmatpush1.msra.mxu0 0.0
        %1308 = vmatprep.subr.mxu0 0.0
        %1309 = vmatpush1.msra.mxu0 0.0
        %1310 = vmatprep.subr.mxu0 0.0
        %1311 = vmatpush1.msra.mxu0 0.0
        %1312 = vmatprep.subr.mxu0 0.0
        %1313 = vmatpush1.msra.mxu0 0.0
        %1314 = vmatprep.subr.mxu0 0.0
        %1315 = vmatpush1.msra.mxu0 0.0
        %1316 = vmatprep.subr.mxu0 0.0
        %1317 = vmatpush1.msra.mxu0 0.0
        %1318 = vmatprep.subr.mxu0 0.0
        %1319 = vmatpush1.msra.mxu0 0.0
        %1320 = vmatprep.subr.mxu0 0.0
        %1321 = vmatpush1.msra.mxu0 0.0
        %1322 = vmatprep.subr.mxu0 0.0
        %1323 = vmatpush1.msra.mxu0 0.0
        %1324 = vmatprep.subr.mxu0 0.0
        %1325 = vmatpush1.msra.mxu0 0.0
        %1326 = vmatprep.subr.mxu0 0.0
        %1327 = vmatpush1.msra.mxu0 0.0
        %1328 = vmatprep.subr.mxu0 0.0
        %1329 = vmatpush1.msra.mxu0 0.0
        %1330 = vmatprep.subr.mxu0 0.0
        %1331 = vmatpush1.msra.mxu0 0.0
        %1332 = vmatprep.subr.mxu0 0.0
        %1333 = vmatpush1.msra.mxu0 0.0
        %1334 = vmatprep.subr.mxu0 0.0
        %1335 = vmatpush1.msra.mxu0 0.0
        %1336 = vmatprep.subr.mxu0 0.0
        %1337 = vmatpush1.msra.mxu0 0.0
        %1338 = vmatprep.subr.mxu0 0.0
        %1339 = vmatpush1.msra.mxu0 0.0
        %1340 = vmatprep.subr.mxu0 0.0
        %1341 = vmatpush1.msra.mxu0 0.0
        %1342 = vmatprep.subr.mxu0 0.0
        %1343 = vmatpush1.msra.mxu0 0.0
        %1344 = vmatprep.subr.mxu0 0.0
        %1345 = vmatpush1.msra.mxu0 0.0
        %1346 = vmatprep.subr.mxu0 0.0
        %1347 = vmatpush1.msra.mxu0 0.0
        %1348 = vmatprep.subr.mxu0 0.0
        %1349 = vmatpush1.msra.mxu0 0.0
        %1350 = vmatprep.subr.mxu0 0.0
        %1351 = vmatpush1.msra.mxu0 0.0
        %1352 = vmatprep.subr.mxu0 0.0
        %1353 = vmatpush1.msra.mxu0 0.0
        %1354 = vmatprep.subr.mxu0 0.0
        %1355 = vmatpush1.msra.mxu0 0.0
        %1356 = vmatprep.mubr.f32.mxu0 0.0
        %1357 = vmatmul.mubr.f32.gmra.mrb[0].mxu0 %v1290
        %v1358 = vpop.f32.mrb[0].mxu0
        %v1359 = vadd.f32 0.0, %v1358
        %v1360 = vpop.f32.mrb[0].mxu0
        %1361 = vdwg.mxu0
        %v1362 = vadd.f32 %v1205, %v1359
        %s1363 = scalar_lea.vmem %s2, 4
        %v1364 = vld [vmem:[%s1363] sm:$0xf]
        %1366 = vset.pattern.permute.xlu0 0
        %1367 = vperm.xlu0 %1366, %v1364
        %v1368 = vpop.permute.xlu0 %1367
        %v1370 = vadd.f32 %v1286, %v1368
        %s1371 = scalar_lea.vmem %s2, 16
        %v1372 = vld [vmem:[%s1371] sm:$0xf]
        %1374 = vset.pattern.permute.xlu0 0
        %1375 = vperm.xlu0 %1374, %v1372
        %v1376 = vpop.permute.xlu0 %1375
        %v1378 = vadd.f32 %v1362, %v1376
        %v1379 = vtanh.pop %v1370
        %v1380 = vmul.f32 %v1378, 0.5
        %v1381 = vtanh.pop %v1380
        %v1382 = vmul.f32 %v1381, 0.5
        %v1383 = vadd.f32 %v1382, 0.5
        %v1384 = vmul.f32 %v1379, %v1383
        %vm1385 = vcmp.ge.s32.totalorder %v289, 4
        %v1386 = vsel %vm1385, 1, 0
        %vm1387 = vcmp.eq.s32.totalorder %v1386, 1
        %v1388 = vsel %vm1387, %v1384, 0.0
        %s1389 = scalar_lea.vmem %s277, 4 [#allocation7]
        %1390 = vst [vmem:[%s1389] sm:$0xf] %v1388
        %s1391 = scalar_lea.vmem %s3, 4
        %v1392 = vld [vmem:[%s1391] sm:$0xf]
        %s1393 = scalar_lea.vmem %s4, 4
        %v1394 = vld [vmem:[%s1393] sm:$0xf]
        %1396 = vset.pattern.permute.xlu0 0
        %1397 = vperm.xlu0 %1396, %v1394
        %v1398 = vpop.permute.xlu0 %1397
        %v1401 = vsel %vm313, %v1392, 0
        %v1404 = vsel %vm317, %v1388, 0
        %1406 = vmatprep.subr.mxu0 0.0
        %1407 = vmatpush1.msra.mxu0 %v1404
        %1408 = vmatprep.subr.mxu0 0.0
        %1409 = vmatpush1.msra.mxu0 0.0
        %1410 = vmatprep.subr.mxu0 0.0
        %1411 = vmatpush1.msra.mxu0 0.0
        %1412 = vmatprep.subr.mxu0 0.0
        %1413 = vmatpush1.msra.mxu0 0.0
        %1414 = vmatprep.subr.mxu0 0.0
        %1415 = vmatpush1.msra.mxu0 0.0
        %1416 = vmatprep.subr.mxu0 0.0
        %1417 = vmatpush1.msra.mxu0 0.0
        %1418 = vmatprep.subr.mxu0 0.0
        %1419 = vmatpush1.msra.mxu0 0.0
        %1420 = vmatprep.subr.mxu0 0.0
        %1421 = vmatpush1.msra.mxu0 0.0
        %1422 = vmatprep.subr.mxu0 0.0
        %1423 = vmatpush1.msra.mxu0 0.0
        %1424 = vmatprep.subr.mxu0 0.0
        %1425 = vmatpush1.msra.mxu0 0.0
        %1426 = vmatprep.subr.mxu0 0.0
        %1427 = vmatpush1.msra.mxu0 0.0
        %1428 = vmatprep.subr.mxu0 0.0
        %1429 = vmatpush1.msra.mxu0 0.0
        %1430 = vmatprep.subr.mxu0 0.0
        %1431 = vmatpush1.msra.mxu0 0.0
        %1432 = vmatprep.subr.mxu0 0.0
        %1433 = vmatpush1.msra.mxu0 0.0
        %1434 = vmatprep.subr.mxu0 0.0
        %1435 = vmatpush1.msra.mxu0 0.0
        %1436 = vmatprep.subr.mxu0 0.0
        %1437 = vmatpush1.msra.mxu0 0.0
        %1438 = vmatprep.subr.mxu0 0.0
        %1439 = vmatpush1.msra.mxu0 0.0
        %1440 = vmatprep.subr.mxu0 0.0
        %1441 = vmatpush1.msra.mxu0 0.0
        %1442 = vmatprep.subr.mxu0 0.0
        %1443 = vmatpush1.msra.mxu0 0.0
        %1444 = vmatprep.subr.mxu0 0.0
        %1445 = vmatpush1.msra.mxu0 0.0
        %1446 = vmatprep.subr.mxu0 0.0
        %1447 = vmatpush1.msra.mxu0 0.0
        %1448 = vmatprep.subr.mxu0 0.0
        %1449 = vmatpush1.msra.mxu0 0.0
        %1450 = vmatprep.subr.mxu0 0.0
        %1451 = vmatpush1.msra.mxu0 0.0
        %1452 = vmatprep.subr.mxu0 0.0
        %1453 = vmatpush1.msra.mxu0 0.0
        %1454 = vmatprep.subr.mxu0 0.0
        %1455 = vmatpush1.msra.mxu0 0.0
        %1456 = vmatprep.subr.mxu0 0.0
        %1457 = vmatpush1.msra.mxu0 0.0
        %1458 = vmatprep.subr.mxu0 0.0
        %1459 = vmatpush1.msra.mxu0 0.0
        %1460 = vmatprep.subr.mxu0 0.0
        %1461 = vmatpush1.msra.mxu0 0.0
        %1462 = vmatprep.subr.mxu0 0.0
        %1463 = vmatpush1.msra.mxu0 0.0
        %1464 = vmatprep.subr.mxu0 0.0
        %1465 = vmatpush1.msra.mxu0 0.0
        %1466 = vmatprep.subr.mxu0 0.0
        %1467 = vmatpush1.msra.mxu0 0.0
        %1468 = vmatprep.subr.mxu0 0.0
        %1469 = vmatpush1.msra.mxu0 0.0
        %1470 = vmatprep.mubr.f32.mxu0 0.0
        %1471 = vmatmul.mubr.f32.gmra.mrb[0].mxu0 %v1401
        %v1472 = vpop.f32.mrb[0].mxu0
        %v1473 = vadd.f32 %v1398, %v1472
        %v1474 = vpop.f32.mrb[0].mxu0
        %1475 = vdwg.mxu0
        %v1476 = vadd.f32 %v1473, %v883
        // Predicated region
        $region49: #{tpu_custom_call.1} parent=39 // pred_check
          %p1477 = pneg %p291
        $region50: #{tpu_custom_call.1} parent=39 // pred_check_branch
          %1479 = sbr.rel (%p1477) target = $region52
        $region51: #{tpu_custom_call.1} parent=39 // pred_region
          %1480 = vst [vmem:[#allocation4] sm:$0xf] 0.0
        $region52: #{tpu_custom_call.1} parent=39 // pred_fallthru
          _
        %1481 = vst [vmem:[#allocation4 + $0x4] sm:$0xf] %v1476
        %v1482 = vld [vmem:[#allocation4] sm:$0xff]
        %vm1483 = vcmask 1044416
        %1484 = vst.msk [vmem:[#allocation4] sm:$0xf] %vm1483, %v1476
        %s1485 = scalar_lea.vmem %s1, 24
        %v1486 = vld [vmem:[%s1485] sm:$0xf]
        %s1487 = scalar_lea.vmem %s1, 60
        %v1488 = vld [vmem:[%s1487] sm:$0xf]
        %s1489 = scalar_lea.vmem %s1, 28
        %v1490 = vld [vmem:[%s1489] sm:$0xf]
        %v1492 = vcombine.high %v1482, %v1482
        %1493 = vrot.lane.b32.xlu0 %v1482, 4
        %v1494 = vpop.permute.xlu0 %1493
        %1495 = vrot.lane.b32.xlu0 %v1492, 4
        %v1496 = vpop.permute.xlu0 %1495
        %v1497 = vsel %vm313, %v1494, %v1496
        %v1499 = vsel %vm313, %v1490, 0
        %v1501 = vsel %vm317, %v1497, 0
        %1503 = vmatprep.subr.mxu0 0.0
        %1504 = vmatpush1.msra.mxu0 %v1501
        %1505 = vmatprep.subr.mxu0 0.0
        %1506 = vmatpush1.msra.mxu0 0.0
        %1507 = vmatprep.subr.mxu0 0.0
        %1508 = vmatpush1.msra.mxu0 0.0
        %1509 = vmatprep.subr.mxu0 0.0
        %1510 = vmatpush1.msra.mxu0 0.0
        %1511 = vmatprep.subr.mxu0 0.0
        %1512 = vmatpush1.msra.mxu0 0.0
        %1513 = vmatprep.subr.mxu0 0.0
        %1514 = vmatpush1.msra.mxu0 0.0
        %1515 = vmatprep.subr.mxu0 0.0
        %1516 = vmatpush1.msra.mxu0 0.0
        %1517 = vmatprep.subr.mxu0 0.0
        %1518 = vmatpush1.msra.mxu0 0.0
        %1519 = vmatprep.subr.mxu0 0.0
        %1520 = vmatpush1.msra.mxu0 0.0
        %1521 = vmatprep.subr.mxu0 0.0
        %1522 = vmatpush1.msra.mxu0 0.0
        %1523 = vmatprep.subr.mxu0 0.0
        %1524 = vmatpush1.msra.mxu0 0.0
        %1525 = vmatprep.subr.mxu0 0.0
        %1526 = vmatpush1.msra.mxu0 0.0
        %1527 = vmatprep.subr.mxu0 0.0
        %1528 = vmatpush1.msra.mxu0 0.0
        %1529 = vmatprep.subr.mxu0 0.0
        %1530 = vmatpush1.msra.mxu0 0.0
        %1531 = vmatprep.subr.mxu0 0.0
        %1532 = vmatpush1.msra.mxu0 0.0
        %1533 = vmatprep.subr.mxu0 0.0
        %1534 = vmatpush1.msra.mxu0 0.0
        %1535 = vmatprep.subr.mxu0 0.0
        %1536 = vmatpush1.msra.mxu0 0.0
        %1537 = vmatprep.subr.mxu0 0.0
        %1538 = vmatpush1.msra.mxu0 0.0
        %1539 = vmatprep.subr.mxu0 0.0
        %1540 = vmatpush1.msra.mxu0 0.0
        %1541 = vmatprep.subr.mxu0 0.0
        %1542 = vmatpush1.msra.mxu0 0.0
        %1543 = vmatprep.subr.mxu0 0.0
        %1544 = vmatpush1.msra.mxu0 0.0
        %1545 = vmatprep.subr.mxu0 0.0
        %1546 = vmatpush1.msra.mxu0 0.0
        %1547 = vmatprep.subr.mxu0 0.0
        %1548 = vmatpush1.msra.mxu0 0.0
        %1549 = vmatprep.subr.mxu0 0.0
        %1550 = vmatpush1.msra.mxu0 0.0
        %1551 = vmatprep.subr.mxu0 0.0
        %1552 = vmatpush1.msra.mxu0 0.0
        %1553 = vmatprep.subr.mxu0 0.0
        %1554 = vmatpush1.msra.mxu0 0.0
        %1555 = vmatprep.subr.mxu0 0.0
        %1556 = vmatpush1.msra.mxu0 0.0
        %1557 = vmatprep.subr.mxu0 0.0
        %1558 = vmatpush1.msra.mxu0 0.0
        %1559 = vmatprep.subr.mxu0 0.0
        %1560 = vmatpush1.msra.mxu0 0.0
        %1561 = vmatprep.subr.mxu0 0.0
        %1562 = vmatpush1.msra.mxu0 0.0
        %1563 = vmatprep.subr.mxu0 0.0
        %1564 = vmatpush1.msra.mxu0 0.0
        %1565 = vmatprep.subr.mxu0 0.0
        %1566 = vmatpush1.msra.mxu0 0.0
        %1567 = vmatprep.mubr.f32.mxu0 0.0
        %1568 = vmatmul.mubr.f32.gmra.mrb[0].mxu0 %v1499
        %v1569 = vpop.f32.mrb[0].mxu0
        %v1570 = vadd.f32 0.0, %v1569
        %v1571 = vpop.f32.mrb[0].mxu0
        %1572 = vdwg.mxu0
        %1573 = vrot.lane.b32.xlu0 %v1482, 8
        %v1574 = vpop.permute.xlu0 %1573
        %1575 = vrot.lane.b32.xlu0 %v1492, 8
        %v1576 = vpop.permute.xlu0 %1575
        %vm1577 = vcmask 64512
        %v1578 = vsel %vm1577, %v1574, %v1576
        %v1580 = vsel %vm313, %v1486, 0
        %v1582 = vsel %vm317, %v1578, 0
        %1584 = vmatprep.subr.mxu0 0.0
        %1585 = vmatpush1.msra.mxu0 %v1582
        %1586 = vmatprep.subr.mxu0 0.0
        %1587 = vmatpush1.msra.mxu0 0.0
        %1588 = vmatprep.subr.mxu0 0.0
        %1589 = vmatpush1.msra.mxu0 0.0
        %1590 = vmatprep.subr.mxu0 0.0
        %1591 = vmatpush1.msra.mxu0 0.0
        %1592 = vmatprep.subr.mxu0 0.0
        %1593 = vmatpush1.msra.mxu0 0.0
        %1594 = vmatprep.subr.mxu0 0.0
        %1595 = vmatpush1.msra.mxu0 0.0
        %1596 = vmatprep.subr.mxu0 0.0
        %1597 = vmatpush1.msra.mxu0 0.0
        %1598 = vmatprep.subr.mxu0 0.0
        %1599 = vmatpush1.msra.mxu0 0.0
        %1600 = vmatprep.subr.mxu0 0.0
        %1601 = vmatpush1.msra.mxu0 0.0
        %1602 = vmatprep.subr.mxu0 0.0
        %1603 = vmatpush1.msra.mxu0 0.0
        %1604 = vmatprep.subr.mxu0 0.0
        %1605 = vmatpush1.msra.mxu0 0.0
        %1606 = vmatprep.subr.mxu0 0.0
        %1607 = vmatpush1.msra.mxu0 0.0
        %1608 = vmatprep.subr.mxu0 0.0
        %1609 = vmatpush1.msra.mxu0 0.0
        %1610 = vmatprep.subr.mxu0 0.0
        %1611 = vmatpush1.msra.mxu0 0.0
        %1612 = vmatprep.subr.mxu0 0.0
        %1613 = vmatpush1.msra.mxu0 0.0
        %1614 = vmatprep.subr.mxu0 0.0
        %1615 = vmatpush1.msra.mxu0 0.0
        %1616 = vmatprep.subr.mxu0 0.0
        %1617 = vmatpush1.msra.mxu0 0.0
        %1618 = vmatprep.subr.mxu0 0.0
        %1619 = vmatpush1.msra.mxu0 0.0
        %1620 = vmatprep.subr.mxu0 0.0
        %1621 = vmatpush1.msra.mxu0 0.0
        %1622 = vmatprep.subr.mxu0 0.0
        %1623 = vmatpush1.msra.mxu0 0.0
        %1624 = vmatprep.subr.mxu0 0.0
        %1625 = vmatpush1.msra.mxu0 0.0
        %1626 = vmatprep.subr.mxu0 0.0
        %1627 = vmatpush1.msra.mxu0 0.0
        %1628 = vmatprep.subr.mxu0 0.0
        %1629 = vmatpush1.msra.mxu0 0.0
        %1630 = vmatprep.subr.mxu0 0.0
        %1631 = vmatpush1.msra.mxu0 0.0
        %1632 = vmatprep.subr.mxu0 0.0
        %1633 = vmatpush1.msra.mxu0 0.0
        %1634 = vmatprep.subr.mxu0 0.0
        %1635 = vmatpush1.msra.mxu0 0.0
        %1636 = vmatprep.subr.mxu0 0.0
        %1637 = vmatpush1.msra.mxu0 0.0
        %1638 = vmatprep.subr.mxu0 0.0
        %1639 = vmatpush1.msra.mxu0 0.0
        %1640 = vmatprep.subr.mxu0 0.0
        %1641 = vmatpush1.msra.mxu0 0.0
        %1642 = vmatprep.subr.mxu0 0.0
        %1643 = vmatpush1.msra.mxu0 0.0
        %1644 = vmatprep.subr.mxu0 0.0
        %1645 = vmatpush1.msra.mxu0 0.0
        %1646 = vmatprep.subr.mxu0 0.0
        %1647 = vmatpush1.msra.mxu0 0.0
        %1648 = vmatprep.mubr.f32.mxu0 0.0
        %1649 = vmatmul.mubr.f32.gmra.mrb[0].mxu0 %v1580
        %v1650 = vpop.f32.mrb[0].mxu0
        %v1651 = vadd.f32 %v1570, %v1650
        %v1652 = vpop.f32.mrb[0].mxu0
        %1653 = vdwg.mxu0
        %s1654 = scalar_lea.vmem %s1, 64
        %v1655 = vld [vmem:[%s1654] sm:$0xf]
        %v1657 = vsel %vm313, %v1655, 0
        %1659 = vmatprep.subr.mxu0 0.0
        %1660 = vmatpush1.msra.mxu0 %v1501
        %1661 = vmatprep.subr.mxu0 0.0
        %1662 = vmatpush1.msra.mxu0 0.0
        %1663 = vmatprep.subr.mxu0 0.0
        %1664 = vmatpush1.msra.mxu0 0.0
        %1665 = vmatprep.subr.mxu0 0.0
        %1666 = vmatpush1.msra.mxu0 0.0
        %1667 = vmatprep.subr.mxu0 0.0
        %1668 = vmatpush1.msra.mxu0 0.0
        %1669 = vmatprep.subr.mxu0 0.0
        %1670 = vmatpush1.msra.mxu0 0.0
        %1671 = vmatprep.subr.mxu0 0.0
        %1672 = vmatpush1.msra.mxu0 0.0
        %1673 = vmatprep.subr.mxu0 0.0
        %1674 = vmatpush1.msra.mxu0 0.0
        %1675 = vmatprep.subr.mxu0 0.0
        %1676 = vmatpush1.msra.mxu0 0.0
        %1677 = vmatprep.subr.mxu0 0.0
        %1678 = vmatpush1.msra.mxu0 0.0
        %1679 = vmatprep.subr.mxu0 0.0
        %1680 = vmatpush1.msra.mxu0 0.0
        %1681 = vmatprep.subr.mxu0 0.0
        %1682 = vmatpush1.msra.mxu0 0.0
        %1683 = vmatprep.subr.mxu0 0.0
        %1684 = vmatpush1.msra.mxu0 0.0
        %1685 = vmatprep.subr.mxu0 0.0
        %1686 = vmatpush1.msra.mxu0 0.0
        %1687 = vmatprep.subr.mxu0 0.0
        %1688 = vmatpush1.msra.mxu0 0.0
        %1689 = vmatprep.subr.mxu0 0.0
        %1690 = vmatpush1.msra.mxu0 0.0
        %1691 = vmatprep.subr.mxu0 0.0
        %1692 = vmatpush1.msra.mxu0 0.0
        %1693 = vmatprep.subr.mxu0 0.0
        %1694 = vmatpush1.msra.mxu0 0.0
        %1695 = vmatprep.subr.mxu0 0.0
        %1696 = vmatpush1.msra.mxu0 0.0
        %1697 = vmatprep.subr.mxu0 0.0
        %1698 = vmatpush1.msra.mxu0 0.0
        %1699 = vmatprep.subr.mxu0 0.0
        %1700 = vmatpush1.msra.mxu0 0.0
        %1701 = vmatprep.subr.mxu0 0.0
        %1702 = vmatpush1.msra.mxu0 0.0
        %1703 = vmatprep.subr.mxu0 0.0
        %1704 = vmatpush1.msra.mxu0 0.0
        %1705 = vmatprep.subr.mxu0 0.0
        %1706 = vmatpush1.msra.mxu0 0.0
        %1707 = vmatprep.subr.mxu0 0.0
        %1708 = vmatpush1.msra.mxu0 0.0
        %1709 = vmatprep.subr.mxu0 0.0
        %1710 = vmatpush1.msra.mxu0 0.0
        %1711 = vmatprep.subr.mxu0 0.0
        %1712 = vmatpush1.msra.mxu0 0.0
        %1713 = vmatprep.subr.mxu0 0.0
        %1714 = vmatpush1.msra.mxu0 0.0
        %1715 = vmatprep.subr.mxu0 0.0
        %1716 = vmatpush1.msra.mxu0 0.0
        %1717 = vmatprep.subr.mxu0 0.0
        %1718 = vmatpush1.msra.mxu0 0.0
        %1719 = vmatprep.subr.mxu0 0.0
        %1720 = vmatpush1.msra.mxu0 0.0
        %1721 = vmatprep.subr.mxu0 0.0
        %1722 = vmatpush1.msra.mxu0 0.0
        %1723 = vmatprep.mubr.f32.mxu0 0.0
        %1724 = vmatmul.mubr.f32.gmra.mrb[0].mxu0 %v1657
        %v1725 = vpop.f32.mrb[0].mxu0
        %v1726 = vadd.f32 0.0, %v1725
        %v1727 = vpop.f32.mrb[0].mxu0
        %1728 = vdwg.mxu0
        %v1730 = vsel %vm313, %v1488, 0
        %1732 = vmatprep.subr.mxu0 0.0
        %1733 = vmatpush1.msra.mxu0 %v1582
        %1734 = vmatprep.subr.mxu0 0.0
        %1735 = vmatpush1.msra.mxu0 0.0
        %1736 = vmatprep.subr.mxu0 0.0
        %1737 = vmatpush1.msra.mxu0 0.0
        %1738 = vmatprep.subr.mxu0 0.0
        %1739 = vmatpush1.msra.mxu0 0.0
        %1740 = vmatprep.subr.mxu0 0.0
        %1741 = vmatpush1.msra.mxu0 0.0
        %1742 = vmatprep.subr.mxu0 0.0
        %1743 = vmatpush1.msra.mxu0 0.0
        %1744 = vmatprep.subr.mxu0 0.0
        %1745 = vmatpush1.msra.mxu0 0.0
        %1746 = vmatprep.subr.mxu0 0.0
        %1747 = vmatpush1.msra.mxu0 0.0
        %1748 = vmatprep.subr.mxu0 0.0
        %1749 = vmatpush1.msra.mxu0 0.0
        %1750 = vmatprep.subr.mxu0 0.0
        %1751 = vmatpush1.msra.mxu0 0.0
        %1752 = vmatprep.subr.mxu0 0.0
        %1753 = vmatpush1.msra.mxu0 0.0
        %1754 = vmatprep.subr.mxu0 0.0
        %1755 = vmatpush1.msra.mxu0 0.0
        %1756 = vmatprep.subr.mxu0 0.0
        %1757 = vmatpush1.msra.mxu0 0.0
        %1758 = vmatprep.subr.mxu0 0.0
        %1759 = vmatpush1.msra.mxu0 0.0
        %1760 = vmatprep.subr.mxu0 0.0
        %1761 = vmatpush1.msra.mxu0 0.0
        %1762 = vmatprep.subr.mxu0 0.0
        %1763 = vmatpush1.msra.mxu0 0.0
        %1764 = vmatprep.subr.mxu0 0.0
        %1765 = vmatpush1.msra.mxu0 0.0
        %1766 = vmatprep.subr.mxu0 0.0
        %1767 = vmatpush1.msra.mxu0 0.0
        %1768 = vmatprep.subr.mxu0 0.0
        %1769 = vmatpush1.msra.mxu0 0.0
        %1770 = vmatprep.subr.mxu0 0.0
        %1771 = vmatpush1.msra.mxu0 0.0
        %1772 = vmatprep.subr.mxu0 0.0
        %1773 = vmatpush1.msra.mxu0 0.0
        %1774 = vmatprep.subr.mxu0 0.0
        %1775 = vmatpush1.msra.mxu0 0.0
        %1776 = vmatprep.subr.mxu0 0.0
        %1777 = vmatpush1.msra.mxu0 0.0
        %1778 = vmatprep.subr.mxu0 0.0
        %1779 = vmatpush1.msra.mxu0 0.0
        %1780 = vmatprep.subr.mxu0 0.0
        %1781 = vmatpush1.msra.mxu0 0.0
        %1782 = vmatprep.subr.mxu0 0.0
        %1783 = vmatpush1.msra.mxu0 0.0
        %1784 = vmatprep.subr.mxu0 0.0
        %1785 = vmatpush1.msra.mxu0 0.0
        %1786 = vmatprep.subr.mxu0 0.0
        %1787 = vmatpush1.msra.mxu0 0.0
        %1788 = vmatprep.subr.mxu0 0.0
        %1789 = vmatpush1.msra.mxu0 0.0
        %1790 = vmatprep.subr.mxu0 0.0
        %1791 = vmatpush1.msra.mxu0 0.0
        %1792 = vmatprep.subr.mxu0 0.0
        %1793 = vmatpush1.msra.mxu0 0.0
        %1794 = vmatprep.subr.mxu0 0.0
        %1795 = vmatpush1.msra.mxu0 0.0
        %1796 = vmatprep.mubr.f32.mxu0 0.0
        %1797 = vmatmul.mubr.f32.gmra.mrb[0].mxu0 %v1730
        %v1798 = vpop.f32.mrb[0].mxu0
        %v1799 = vadd.f32 %v1726, %v1798
        %v1800 = vpop.f32.mrb[0].mxu0
        %1801 = vdwg.mxu0
        %s1802 = scalar_lea.vmem %s1, 32
        %v1803 = vld [vmem:[%s1802] sm:$0xf]
        %v1805 = vsel %vm313, %v1803, 0
        %v1808 = vsel %vm317, %v1476, 0
        %1810 = vmatprep.subr.mxu0 0.0
        %1811 = vmatpush1.msra.mxu0 %v1808
        %1812 = vmatprep.subr.mxu0 0.0
        %1813 = vmatpush1.msra.mxu0 0.0
        %1814 = vmatprep.subr.mxu0 0.0
        %1815 = vmatpush1.msra.mxu0 0.0
        %1816 = vmatprep.subr.mxu0 0.0
        %1817 = vmatpush1.msra.mxu0 0.0
        %1818 = vmatprep.subr.mxu0 0.0
        %1819 = vmatpush1.msra.mxu0 0.0
        %1820 = vmatprep.subr.mxu0 0.0
        %1821 = vmatpush1.msra.mxu0 0.0
        %1822 = vmatprep.subr.mxu0 0.0
        %1823 = vmatpush1.msra.mxu0 0.0
        %1824 = vmatprep.subr.mxu0 0.0
        %1825 = vmatpush1.msra.mxu0 0.0
        %1826 = vmatprep.subr.mxu0 0.0
        %1827 = vmatpush1.msra.mxu0 0.0
        %1828 = vmatprep.subr.mxu0 0.0
        %1829 = vmatpush1.msra.mxu0 0.0
        %1830 = vmatprep.subr.mxu0 0.0
        %1831 = vmatpush1.msra.mxu0 0.0
        %1832 = vmatprep.subr.mxu0 0.0
        %1833 = vmatpush1.msra.mxu0 0.0
        %1834 = vmatprep.subr.mxu0 0.0
        %1835 = vmatpush1.msra.mxu0 0.0
        %1836 = vmatprep.subr.mxu0 0.0
        %1837 = vmatpush1.msra.mxu0 0.0
        %1838 = vmatprep.subr.mxu0 0.0
        %1839 = vmatpush1.msra.mxu0 0.0
        %1840 = vmatprep.subr.mxu0 0.0
        %1841 = vmatpush1.msra.mxu0 0.0
        %1842 = vmatprep.subr.mxu0 0.0
        %1843 = vmatpush1.msra.mxu0 0.0
        %1844 = vmatprep.subr.mxu0 0.0
        %1845 = vmatpush1.msra.mxu0 0.0
        %1846 = vmatprep.subr.mxu0 0.0
        %1847 = vmatpush1.msra.mxu0 0.0
        %1848 = vmatprep.subr.mxu0 0.0
        %1849 = vmatpush1.msra.mxu0 0.0
        %1850 = vmatprep.subr.mxu0 0.0
        %1851 = vmatpush1.msra.mxu0 0.0
        %1852 = vmatprep.subr.mxu0 0.0
        %1853 = vmatpush1.msra.mxu0 0.0
        %1854 = vmatprep.subr.mxu0 0.0
        %1855 = vmatpush1.msra.mxu0 0.0
        %1856 = vmatprep.subr.mxu0 0.0
        %1857 = vmatpush1.msra.mxu0 0.0
        %1858 = vmatprep.subr.mxu0 0.0
        %1859 = vmatpush1.msra.mxu0 0.0
        %1860 = vmatprep.subr.mxu0 0.0
        %1861 = vmatpush1.msra.mxu0 0.0
        %1862 = vmatprep.subr.mxu0 0.0
        %1863 = vmatpush1.msra.mxu0 0.0
        %1864 = vmatprep.subr.mxu0 0.0
        %1865 = vmatpush1.msra.mxu0 0.0
        %1866 = vmatprep.subr.mxu0 0.0
        %1867 = vmatpush1.msra.mxu0 0.0
        %1868 = vmatprep.subr.mxu0 0.0
        %1869 = vmatpush1.msra.mxu0 0.0
        %1870 = vmatprep.subr.mxu0 0.0
        %1871 = vmatpush1.msra.mxu0 0.0
        %1872 = vmatprep.subr.mxu0 0.0
        %1873 = vmatpush1.msra.mxu0 0.0
        %1874 = vmatprep.mubr.f32.mxu0 0.0
        %1875 = vmatmul.mubr.f32.gmra.mrb[0].mxu0 %v1805
        %v1876 = vpop.f32.mrb[0].mxu0
        %v1877 = vadd.f32 0.0, %v1876
        %v1878 = vpop.f32.mrb[0].mxu0
        %1879 = vdwg.mxu0
        %v1880 = vadd.f32 %v1651, %v1877
        %s1881 = scalar_lea.vmem %s1, 68
        %v1882 = vld [vmem:[%s1881] sm:$0xf]
        %v1884 = vsel %vm313, %v1882, 0
        %1886 = vmatprep.subr.mxu0 0.0
        %1887 = vmatpush1.msra.mxu0 %v1808
        %1888 = vmatprep.subr.mxu0 0.0
        %1889 = vmatpush1.msra.mxu0 0.0
        %1890 = vmatprep.subr.mxu0 0.0
        %1891 = vmatpush1.msra.mxu0 0.0
        %1892 = vmatprep.subr.mxu0 0.0
        %1893 = vmatpush1.msra.mxu0 0.0
        %1894 = vmatprep.subr.mxu0 0.0
        %1895 = vmatpush1.msra.mxu0 0.0
        %1896 = vmatprep.subr.mxu0 0.0
        %1897 = vmatpush1.msra.mxu0 0.0
        %1898 = vmatprep.subr.mxu0 0.0
        %1899 = vmatpush1.msra.mxu0 0.0
        %1900 = vmatprep.subr.mxu0 0.0
        %1901 = vmatpush1.msra.mxu0 0.0
        %1902 = vmatprep.subr.mxu0 0.0
        %1903 = vmatpush1.msra.mxu0 0.0
        %1904 = vmatprep.subr.mxu0 0.0
        %1905 = vmatpush1.msra.mxu0 0.0
        %1906 = vmatprep.subr.mxu0 0.0
        %1907 = vmatpush1.msra.mxu0 0.0
        %1908 = vmatprep.subr.mxu0 0.0
        %1909 = vmatpush1.msra.mxu0 0.0
        %1910 = vmatprep.subr.mxu0 0.0
        %1911 = vmatpush1.msra.mxu0 0.0
        %1912 = vmatprep.subr.mxu0 0.0
        %1913 = vmatpush1.msra.mxu0 0.0
        %1914 = vmatprep.subr.mxu0 0.0
        %1915 = vmatpush1.msra.mxu0 0.0
        %1916 = vmatprep.subr.mxu0 0.0
        %1917 = vmatpush1.msra.mxu0 0.0
        %1918 = vmatprep.subr.mxu0 0.0
        %1919 = vmatpush1.msra.mxu0 0.0
        %1920 = vmatprep.subr.mxu0 0.0
        %1921 = vmatpush1.msra.mxu0 0.0
        %1922 = vmatprep.subr.mxu0 0.0
        %1923 = vmatpush1.msra.mxu0 0.0
        %1924 = vmatprep.subr.mxu0 0.0
        %1925 = vmatpush1.msra.mxu0 0.0
        %1926 = vmatprep.subr.mxu0 0.0
        %1927 = vmatpush1.msra.mxu0 0.0
        %1928 = vmatprep.subr.mxu0 0.0
        %1929 = vmatpush1.msra.mxu0 0.0
        %1930 = vmatprep.subr.mxu0 0.0
        %1931 = vmatpush1.msra.mxu0 0.0
        %1932 = vmatprep.subr.mxu0 0.0
        %1933 = vmatpush1.msra.mxu0 0.0
        %1934 = vmatprep.subr.mxu0 0.0
        %1935 = vmatpush1.msra.mxu0 0.0
        %1936 = vmatprep.subr.mxu0 0.0
        %1937 = vmatpush1.msra.mxu0 0.0
        %1938 = vmatprep.subr.mxu0 0.0
        %1939 = vmatpush1.msra.mxu0 0.0
        %1940 = vmatprep.subr.mxu0 0.0
        %1941 = vmatpush1.msra.mxu0 0.0
        %1942 = vmatprep.subr.mxu0 0.0
        %1943 = vmatpush1.msra.mxu0 0.0
        %1944 = vmatprep.subr.mxu0 0.0
        %1945 = vmatpush1.msra.mxu0 0.0
        %1946 = vmatprep.subr.mxu0 0.0
        %1947 = vmatpush1.msra.mxu0 0.0
        %1948 = vmatprep.subr.mxu0 0.0
        %1949 = vmatpush1.msra.mxu0 0.0
        %1950 = vmatprep.mubr.f32.mxu0 0.0
        %1951 = vmatmul.mubr.f32.gmra.mrb[0].mxu0 %v1884
        %v1952 = vpop.f32.mrb[0].mxu0
        %v1953 = vadd.f32 0.0, %v1952
        %v1954 = vpop.f32.mrb[0].mxu0
        %1955 = vdwg.mxu0
        %v1956 = vadd.f32 %v1799, %v1953
        %s1957 = scalar_lea.vmem %s2, 8
        %v1958 = vld [vmem:[%s1957] sm:$0xf]
        %1960 = vset.pattern.permute.xlu0 0
        %1961 = vperm.xlu0 %1960, %v1958
        %v1962 = vpop.permute.xlu0 %1961
        %v1964 = vadd.f32 %v1880, %v1962
        %s1965 = scalar_lea.vmem %s2, 20
        %v1966 = vld [vmem:[%s1965] sm:$0xf]
        %1968 = vset.pattern.permute.xlu0 0
        %1969 = vperm.xlu0 %1968, %v1966
        %v1970 = vpop.permute.xlu0 %1969
        %v1972 = vadd.f32 %v1956, %v1970
        %v1973 = vtanh.pop %v1964
        %v1974 = vmul.f32 %v1972, 0.5
        %v1975 = vtanh.pop %v1974
        %v1976 = vmul.f32 %v1975, 0.5
        %v1977 = vadd.f32 %v1976, 0.5
        %v1978 = vmul.f32 %v1973, %v1977
        %vm1979 = vcmp.ge.s32.totalorder %v289, 8
        %v1980 = vsel %vm1979, 1, 0
        %vm1981 = vcmp.eq.s32.totalorder %v1980, 1
        %v1982 = vsel %vm1981, %v1978, 0.0
        %s1983 = scalar_lea.vmem %s277, 8 [#allocation7]
        %1984 = vst [vmem:[%s1983] sm:$0xf] %v1982
        %s1985 = scalar_lea.vmem %s3, 8
        %v1986 = vld [vmem:[%s1985] sm:$0xf]
        %s1987 = scalar_lea.vmem %s4, 8
        %v1988 = vld [vmem:[%s1987] sm:$0xf]
        %1990 = vset.pattern.permute.xlu0 0
        %1991 = vperm.xlu0 %1990, %v1988
        %v1992 = vpop.permute.xlu0 %1991
        %v1995 = vsel %vm313, %v1986, 0
        %v1998 = vsel %vm317, %v1982, 0
        %2000 = vmatprep.subr.mxu0 0.0
        %2001 = vmatpush1.msra.mxu0 %v1998
        %2002 = vmatprep.subr.mxu0 0.0
        %2003 = vmatpush1.msra.mxu0 0.0
        %2004 = vmatprep.subr.mxu0 0.0
        %2005 = vmatpush1.msra.mxu0 0.0
        %2006 = vmatprep.subr.mxu0 0.0
        %2007 = vmatpush1.msra.mxu0 0.0
        %2008 = vmatprep.subr.mxu0 0.0
        %2009 = vmatpush1.msra.mxu0 0.0
        %2010 = vmatprep.subr.mxu0 0.0
        %2011 = vmatpush1.msra.mxu0 0.0
        %2012 = vmatprep.subr.mxu0 0.0
        %2013 = vmatpush1.msra.mxu0 0.0
        %2014 = vmatprep.subr.mxu0 0.0
        %2015 = vmatpush1.msra.mxu0 0.0
        %2016 = vmatprep.subr.mxu0 0.0
        %2017 = vmatpush1.msra.mxu0 0.0
        %2018 = vmatprep.subr.mxu0 0.0
        %2019 = vmatpush1.msra.mxu0 0.0
        %2020 = vmatprep.subr.mxu0 0.0
        %2021 = vmatpush1.msra.mxu0 0.0
        %2022 = vmatprep.subr.mxu0 0.0
        %2023 = vmatpush1.msra.mxu0 0.0
        %2024 = vmatprep.subr.mxu0 0.0
        %2025 = vmatpush1.msra.mxu0 0.0
        %2026 = vmatprep.subr.mxu0 0.0
        %2027 = vmatpush1.msra.mxu0 0.0
        %2028 = vmatprep.subr.mxu0 0.0
        %2029 = vmatpush1.msra.mxu0 0.0
        %2030 = vmatprep.subr.mxu0 0.0
        %2031 = vmatpush1.msra.mxu0 0.0
        %2032 = vmatprep.subr.mxu0 0.0
        %2033 = vmatpush1.msra.mxu0 0.0
        %2034 = vmatprep.subr.mxu0 0.0
        %2035 = vmatpush1.msra.mxu0 0.0
        %2036 = vmatprep.subr.mxu0 0.0
        %2037 = vmatpush1.msra.mxu0 0.0
        %2038 = vmatprep.subr.mxu0 0.0
        %2039 = vmatpush1.msra.mxu0 0.0
        %2040 = vmatprep.subr.mxu0 0.0
        %2041 = vmatpush1.msra.mxu0 0.0
        %2042 = vmatprep.subr.mxu0 0.0
        %2043 = vmatpush1.msra.mxu0 0.0
        %2044 = vmatprep.subr.mxu0 0.0
        %2045 = vmatpush1.msra.mxu0 0.0
        %2046 = vmatprep.subr.mxu0 0.0
        %2047 = vmatpush1.msra.mxu0 0.0
        %2048 = vmatprep.subr.mxu0 0.0
        %2049 = vmatpush1.msra.mxu0 0.0
        %2050 = vmatprep.subr.mxu0 0.0
        %2051 = vmatpush1.msra.mxu0 0.0
        %2052 = vmatprep.subr.mxu0 0.0
        %2053 = vmatpush1.msra.mxu0 0.0
        %2054 = vmatprep.subr.mxu0 0.0
        %2055 = vmatpush1.msra.mxu0 0.0
        %2056 = vmatprep.subr.mxu0 0.0
        %2057 = vmatpush1.msra.mxu0 0.0
        %2058 = vmatprep.subr.mxu0 0.0
        %2059 = vmatpush1.msra.mxu0 0.0
        %2060 = vmatprep.subr.mxu0 0.0
        %2061 = vmatpush1.msra.mxu0 0.0
        %2062 = vmatprep.subr.mxu0 0.0
        %2063 = vmatpush1.msra.mxu0 0.0
        %2064 = vmatprep.mubr.f32.mxu0 0.0
        %2065 = vmatmul.mubr.f32.gmra.mrb[0].mxu0 %v1995
        %v2066 = vpop.f32.mrb[0].mxu0
        %v2067 = vadd.f32 %v1992, %v2066
        %v2068 = vpop.f32.mrb[0].mxu0
        %2069 = vdwg.mxu0
        %v2070 = vadd.f32 %v2067, %v1476
        %2071 = vst [vmem:[%s270] sm:$0xf] %v2070
        %s2072 = sand.u32 %s158, 1
        %s2073 = scalar_lea.sflag [#allocation6], %s2072
        %s2074 = sand.u32 %s158, 1
        %s2075 = smul.addr %s2074, 4
        %s2076 = scalar_lea.vmem [#allocation5], %s2075
        %s2077 = sand.u32 %s186, 1
        %s2078 = scalar_lea.sflag [#allocation8], %s2077
        %s2079 = sand.u32 %s186, 1
        %s2080 = smul.addr %s2079, 12
        %s2081 = scalar_lea.vmem [#allocation7], %s2080
        // Predicated region
        $region53: #{tpu_custom_call.1} parent=39 // pred_check
          %p2082 = pneg %p168
        $region54: #{tpu_custom_call.1} parent=39 // pred_check_branch
          %2084 = sbr.rel (%p2082) target = $region56
        $region55: #{tpu_custom_call.1} parent=39 // pred_region
          %s2086 = ssub.s32 64, 64
          %2087 = vsyncadd %s2073, %s2086
          %s2088 = sadd.s32 %s29, %s28
          %s2089 = smul.addr %s2088, 64
          %s2090 = scalar_lea.hbm %s5, %s2089
          %s2092 = sshll.u32 %s2076, 4
          %s2093 = int_to_ptr.vmem [resolvable:$true] %s2092
          %2095 = dma.vmem_to_hbm [thread:$0]  %s2093, 64, %s2090, %s2073
        $region56: #{tpu_custom_call.1} parent=39 // pred_fallthru
          _
        // Predicated region
        $region57: #{tpu_custom_call.1} parent=39 // pred_check
          %p2096 = pneg %p196
        $region58: #{tpu_custom_call.1} parent=39 // pred_check_branch
          %2098 = sbr.rel (%p2096) target = $region60
        $region59: #{tpu_custom_call.1} parent=39 // pred_region
          %s2100 = ssub.s32 192, 192
          %2101 = vsyncadd %s2078, %s2100
          %s2102 = smul.addr %s28, 3
          %s2103 = sadd.s32 %s29, %s2102
          %s2104 = smul.addr %s2103, 64
          %s2105 = scalar_lea.hbm %s6, %s2104
          %s2106 = sshll.u32 %s2081, 4
          %s2107 = int_to_ptr.vmem [resolvable:$true] %s2106
          %2112 = dma.vmem_to_hbm [thread:$0]  %s2107, 192, %s2105, %s2078, 64, 64, 4
        $region60: #{tpu_custom_call.1} parent=39 // pred_fallthru
          _
      $region40: #{tpu_custom_call.1} parent=5 // pred_fallthru
        _
      %p2113 = scmp.le.s32.totalorder 2, %s19
      // Predicated region
      $region61: #{tpu_custom_call.1} parent=5 // pred_check
        %p2114 = pneg %p2113
      $region62: #{tpu_custom_call.1} parent=5 // pred_check_branch
        %2116 = sbr.rel (%p2114) target = $region64
      $region63: #{tpu_custom_call.1} parent=5 // pred_region
        %s2117 = ssub.s32 %s19, 2
        // Predicated region
        $region65: #{tpu_custom_call.1} parent=63 // pred_check
          %p2118 = pneg %p174
        $region66: #{tpu_custom_call.1} parent=63 // pred_check_branch
          %2120 = sbr.rel (%p2118) target = $region68
        $region67: #{tpu_custom_call.1} parent=63 // pred_region
          %s2121 = sand.u32 %s159, 1
          %s2122 = scalar_lea.sflag [#allocation6], %s2121
          %s2123 = sand.u32 %s159, 1
          %s2124 = smul.addr %s2123, 4
          %s2125 = scalar_lea.vmem [#allocation5], %s2124
          %2126 = dma.done %s2122, 64
        $region68: #{tpu_custom_call.1} parent=63 // pred_fallthru
          _
        // Predicated region
        $region69: #{tpu_custom_call.1} parent=63 // pred_check
          %p2127 = pneg %p202
        $region70: #{tpu_custom_call.1} parent=63 // pred_check_branch
          %2129 = sbr.rel (%p2127) target = $region72
        $region71: #{tpu_custom_call.1} parent=63 // pred_region
          %s2130 = sand.u32 %s187, 1
          %s2131 = scalar_lea.sflag [#allocation8], %s2130
          %s2132 = sand.u32 %s187, 1
          %s2133 = smul.addr %s2132, 12
          %s2134 = scalar_lea.vmem [#allocation7], %s2133
          %2135 = dma.done %s2131, 192
        $region72: #{tpu_custom_call.1} parent=63 // pred_fallthru
          _
      $region64: #{tpu_custom_call.1} parent=5 // pred_fallthru
        _
    $region6: #{tpu_custom_call.1} parent=1 // loop_footer
      %s23 = sadd.s32 1, %s19
    $region7: #{tpu_custom_call.1} parent=1 // loop_footer_branch
      %18 = sbr.rel target = $region3
    $region8: #{tpu_custom_call.1} parent=1 // loop_exit
      _
    %2136 = vsyncpa [#allocation6], 1
    %s2137 = scalar_lea.sflag [#allocation6], 1
    %2138 = vsyncpa %s2137, 1
    %2139 = vsyncpa [#allocation8], 1
    %s2140 = scalar_lea.sflag [#allocation8], 1
    %2141 = vsyncpa %s2140, 1

</llo_original>
